<compile_context>
chip_gen: v7x
topology: tpu7x:2x2x1
jax: 0.10.0
libtpu: 0.0.40
codegen_flags: <defaults>
</compile_context>

<pallas_src>
import functools

import jax
import jax.numpy as jnp
from jax.experimental import pallas as pl
from jax.experimental.pallas import tpu as pltpu


# ----------------------------------------------------------------------------
# Generation-aware VMEM budget / tile caps
# ----------------------------------------------------------------------------
def _vmem_budget_bytes():
    """Scoped VMEM budget with headroom: ~96 MiB on v5e/v6e (128 MiB physical),
    ~40 MiB on v7x (64 MiB physical). Conservative default if the query fails."""
    cap = 64 * 1024 * 1024
    try:
        if jax.devices()[0].platform == "tpu":
            cap = int(pltpu.get_tpu_info().vmem_capacity_bytes)
    except Exception:
        pass
    return max(cap * 5 // 8, cap - 32 * 1024 * 1024)


_VMEM_BUDGET = _vmem_budget_bytes()


def _tile_caps():
    # bigger tiles on 128-MiB-VMEM parts (v5e/v6e), smaller on v7x (64 MiB)
    if _VMEM_BUDGET >= 80 * 1024 * 1024:
        return 1024, 512
    return 512, 512


def _round_up(x, m):
    return ((x + m - 1) // m) * m


def _pad2(x, rows, cols):
    r, c = x.shape
    return jnp.pad(x.astype(jnp.float32), ((0, rows - r), (0, cols - c)))


def _pick_tile(dim, cap):
    t = min(cap, dim)
    while dim % t:
        t //= 2
    return t


# ----------------------------------------------------------------------------
# Shared epilogue: out = standardize(relu(nf*z + h)).
# Two-pass (mean-centered) variance on masked data -> no sum_sq cancellation.
# ----------------------------------------------------------------------------
def _relu_standardize(z, h, nf, n_rows, n_cols):
    zz = jnp.maximum(nf * z + h, 0.0)
    row = jax.lax.broadcasted_iota(jnp.int32, zz.shape, 0)
    col = jax.lax.broadcasted_iota(jnp.int32, zz.shape, 1)
    valid = (row < n_rows) & (col < n_cols)
    zz = jnp.where(valid, zz, 0.0)
    n_el = n_rows * n_cols
    col_sum = jnp.sum(zz, axis=0, keepdims=True)
    col_mean = col_sum * (1.0 / n_rows)
    g_mean = jnp.sum(col_sum) * (1.0 / n_el)
    dev = jnp.where(valid, zz - g_mean, 0.0)
    var = jnp.sum(dev * dev) * (1.0 / (n_el - 1))       # torch .std(): unbiased (ddof=1)
    out = (zz - col_mean) * jax.lax.rsqrt(var)
    return jnp.where(valid, out, 0.0)


# ----------------------------------------------------------------------------
# Fully fused forward (single pallas_call) -- used whenever the whole working
# set fits in VMEM (the shipped config pads to a single 128x128 tile).
# ----------------------------------------------------------------------------
def _fused_kernel(a_ref, x_ref, w1_ref, w2_ref, ad_ref,
                  w0t_ref, b0_ref, w1t_ref, b1_ref, scal_ref, out_ref,
                  *, n_steps, n_rows, n_cols):
    f32 = jnp.float32
    A = a_ref[...]
    # --- AGCN: H = ((A @ w1) @ A^T @ w2) @ X  (f32 feed, f32 accumulate) ---
    t = jnp.dot(A, w1_ref[...], preferred_element_type=f32)
    t = jax.lax.dot_general(t, A, (((1,), (1,)), ((), ())),          # .. @ A^T
                            preferred_element_type=f32)
    t = jnp.dot(t, w2_ref[...], preferred_element_type=f32)
    H = jnp.dot(t, x_ref[...], preferred_element_type=f32)
    # --- embed = H @ H^T, row-normalized (F.normalize(dim=1), eps=1e-12) ---
    E = jax.lax.dot_general(H, H, (((1,), (1,)), ((), ())),
                            preferred_element_type=f32)
    sq = jnp.sum(E * E, axis=1, keepdims=True)
    E = E * jax.lax.rsqrt(jnp.maximum(sq, 1e-24))
    # --- extractor: Linear(N->hid) -> dropout (identity in eval) -> Linear(hid->hid) ---
    # TODO(synk): nn.Dropout between the two Linear layers is stochastic (training only).
    h = jnp.dot(E, w0t_ref[...], preferred_element_type=f32) + b0_ref[0:1, :]
    h = jnp.dot(h, w1t_ref[...], preferred_element_type=f32) + b1_ref[0:1, :]
    rows = jax.lax.broadcasted_iota(jnp.int32, h.shape, 0)
    h = jnp.where(rows < n_rows, h, 0.0)                 # biases leak into padded rows
    # --- diffusion (ConstantODEblock1): explicit Euler on dz/dt = alpha*(Ad z - z) ---
    # TODO(synk): LaplacianODEFunc source not provided; GRAND-style alpha*(A z - z) with
    #             fixed-step Euler (method='euler', step_size=1) per the odeint options.
    sc = scal_ref[...]
    alpha, om_alpha, nf = sc[0:1, :], sc[1:2, :], sc[2:3, :]
    Ad = ad_ref[...]

    def step(_, z):
        return om_alpha * z + alpha * jnp.dot(Ad, z, preferred_element_type=f32)

    z = jax.lax.fori_loop(0, n_steps, step, h)
    # --- head: relu(nf*z + h) -> column-center, divide by global unbiased std ---
    out_ref[...] = _relu_standardize(z, h, nf, n_rows, n_cols)


def _fused_forward(Ap, Xp, w1p, w2p, Adp, W0Tp, b0p, W1Tp, b1p, scal_rows,
                   *, n_steps, n_rows, n_cols):
    N_pad, hid_pad = W0Tp.shape
    vspec = pl.BlockSpec(memory_space=pltpu.MemorySpace.VMEM)
    flops = 10 * N_pad ** 3 + (4 + 2 * max(n_steps, 1)) * N_pad * N_pad * hid_pad
    bytes_acc = (5 * N_pad * N_pad + 3 * N_pad * hid_pad + 2 * hid_pad * hid_pad) * 4
    return pl.pallas_call(
        functools.partial(_fused_kernel, n_steps=n_steps, n_rows=n_rows, n_cols=n_cols),
        out_shape=jax.ShapeDtypeStruct((N_pad, hid_pad), jnp.float32),
        in_specs=[vspec] * 10,
        out_specs=vspec,
        compiler_params=pltpu.CompilerParams(vmem_limit_bytes=_VMEM_BUDGET),
        cost_estimate=pl.CostEstimate(flops=int(flops), transcendentals=int(2 * N_pad),
                                      bytes_accessed=int(bytes_acc)),
    )(Ap, Xp, w1p, w2p, Adp, W0Tp, b0p, W1Tp, b1p, scal_rows)


# ----------------------------------------------------------------------------
# Tiled fallback for graphs too large to keep fully resident in VMEM.
# ----------------------------------------------------------------------------
def _mm_kernel(a_ref, b_ref, o_ref, acc_ref):
    @pl.when(pl.program_id(2) == 0)
    def _():
        acc_ref[...] = jnp.zeros_like(acc_ref)

    acc_ref[...] += jnp.dot(a_ref[...], b_ref[...], preferred_element_type=jnp.float32)

    @pl.when(pl.program_id(2) == pl.num_programs(2) - 1)
    def _():
        o_ref[...] = acc_ref[...].astype(o_ref.dtype)


def _tiled_matmul(a, b, *, out_dtype):
    M, K = a.shape
    N = b.shape[1]
    mn_cap, k_cap = _tile_caps()
    tm, tn, tk = _pick_tile(M, mn_cap), _pick_tile(N, mn_cap), _pick_tile(K, k_cap)
    return pl.pallas_call(
        _mm_kernel,
        out_shape=jax.ShapeDtypeStruct((M, N), out_dtype),
        grid=(M // tm, N // tn, K // tk),
        in_specs=[pl.BlockSpec((tm, tk), lambda i, j, k: (i, k)),
                  pl.BlockSpec((tk, tn), lambda i, j, k: (k, j))],
        out_specs=pl.BlockSpec((tm, tn), lambda i, j, k: (i, j)),
        scratch_shapes=[pltpu.VMEM((tm, tn), jnp.float32)],
        compiler_params=pltpu.CompilerParams(
            dimension_semantics=("parallel", "parallel", "arbitrary"),
            vmem_limit_bytes=_VMEM_BUDGET),
        cost_estimate=pl.CostEstimate(
            flops=int(2 * M * N * K), transcendentals=0,
            bytes_accessed=int(a.size * a.dtype.itemsize + b.size * b.dtype.itemsize
                               + M * N * jnp.dtype(out_dtype).itemsize)),
    )(a, b)


def _embed_extract_kernel(hi_ref, hk_ref, w0t_ref, b0_ref, w1t_ref, b1_ref,
                          h_ref, eb_ref, lin_ref, sq_ref, *, n_valid_rows):
    # program ids bound only at top level (interpret-safe, captured by pl.when closures)
    k, d = pl.program_id(1), pl.program_id(2)
    nk, nd = pl.num_programs(1), pl.num_programs(2)
    row0 = pl.program_id(0) * hi_ref.shape[0]

    @pl.when((k == 0) & (d == 0))
    def _():
        lin_ref[...] = jnp.zeros_like(lin_ref)
        sq_ref[...] = jnp.zeros_like(sq_ref)

    @pl.when(d == 0)
    def _():
        eb_ref[...] = jnp.zeros_like(eb_ref)

    # partial block of embed = H H^T (contraction over H's feature axis tiled by d,
    # so VMEM use no longer scales with N_pad)
    eb_ref[...] += jax.lax.dot_general(hi_ref[...], hk_ref[...],
                                       (((1,), (1,)), ((), ())),
                                       preferred_element_type=jnp.float32)

    @pl.when(d == nd - 1)
    def _():
        eb = eb_ref[...]
        sq_ref[...] += jnp.sum(eb * eb, axis=1, keepdims=True)
        lin_ref[...] += jnp.dot(eb.astype(w0t_ref.dtype), w0t_ref[...],
                                preferred_element_type=jnp.float32)

    @pl.when((k == nk - 1) & (d == nd - 1))
    def _():
        # F.normalize(embed, dim=1) commutes with Linear0, so only the row norms and
        # embed @ W0^T were accumulated; finalize: normalize, bias, Linear1, mask pad rows.
        inv = jax.lax.rsqrt(jnp.maximum(sq_ref[...], 1e-24))
        h0 = lin_ref[...] * inv + b0_ref[...]
        h1 = jnp.dot(h0.astype(w1t_ref.dtype), w1t_ref[...],
                     preferred_element_type=jnp.float32) + b1_ref[...]
        rows = jax.lax.broadcasted_iota(jnp.int32, h1.shape, 0) + row0
        h_ref[...] = jnp.where(rows < n_valid_rows, h1, 0.0)


def _embed_extract(H, W0T, b0, W1T, b1, *, n_valid_rows):
    N_pad = H.shape[0]
    hid_pad = W0T.shape[1]
    mn_cap, k_cap = _tile_caps()
    tm = _pick_tile(N_pad, mn_cap)
    tk = _pick_tile(N_pad, 512)
    td = _pick_tile(N_pad, k_cap)
    return pl.pallas_call(
        functools.partial(_embed_extract_kernel, n_valid_rows=n_valid_rows),
        out_shape=jax.ShapeDtypeStruct((N_pad, hid_pad), jnp.float32),
        grid=(N_pad // tm, N_pad // tk, N_pad // td),
        in_specs=[pl.BlockSpec((tm, td), lambda i, k, d: (i, d)),
                  pl.BlockSpec((tk, td), lambda i, k, d: (k, d)),
                  pl.BlockSpec((tk, hid_pad), lambda i, k, d: (k, 0)),
                  pl.BlockSpec((1, hid_pad), lambda i, k, d: (0, 0)),
                  pl.BlockSpec((hid_pad, hid_pad), lambda i, k, d: (0, 0)),
                  pl.BlockSpec((1, hid_pad), lambda i, k, d: (0, 0))],
        out_specs=pl.BlockSpec((tm, hid_pad), lambda i, k, d: (i, 0)),
        scratch_shapes=[pltpu.VMEM((tm, tk), jnp.float32),
                        pltpu.VMEM((tm, hid_pad), jnp.float32),
                        pltpu.VMEM((tm, 1), jnp.float32)],
        compiler_params=pltpu.CompilerParams(
            dimension_semantics=("parallel", "arbitrary", "arbitrary"),
            vmem_limit_bytes=_VMEM_BUDGET),
    )(H, H, W0T, b0, W1T, b1)


def _diffuse_kernel(h_ref, ad_ref, scal_ref, zout_ref, za_ref, zb_ref, acc_ref):
    s, i, k = pl.program_id(0), pl.program_id(1), pl.program_id(2)
    ni, nk = pl.num_programs(1), pl.num_programs(2)
    tm, tk = ad_ref.shape

    # step 0 / first row-block: load h as z0 into the resident VMEM copy of z
    @pl.when((s == 0) & (i == 0))
    def _():
        za_ref[pl.ds(k * tk, tk), :] = h_ref[...]

    @pl.when(k == 0)
    def _():
        acc_ref[...] = jnp.zeros_like(acc_ref)

    zk = za_ref[pl.ds(k * tk, tk), :]
    acc_ref[...] += jnp.dot(ad_ref[...], zk.astype(ad_ref.dtype),
                            preferred_element_type=jnp.float32)

    @pl.when(k == nk - 1)
    def _():
        zi = za_ref[pl.ds(i * tm, tm), :]
        znew = scal_ref[1] * zi + scal_ref[0] * acc_ref[...]
        zb_ref[pl.ds(i * tm, tm), :] = znew
        zout_ref[...] = znew

    # end of the Euler step: commit z_{s+1} (Jacobi update -> buffer swap by copy)
    @pl.when((k == nk - 1) & (i == ni - 1))
    def _():
        za_ref[...] = zb_ref[...]


def _diffuse(h, Ad, scal, *, n_steps):
    if n_steps == 0:
        return h
    N_pad, hid_pad = h.shape
    mn_cap, k_cap = _tile_caps()
    tm = _pick_tile(N_pad, mn_cap)
    tk = _pick_tile(N_pad, k_cap)
    return pl.pallas_call(
        _diffuse_kernel,
        out_shape=jax.ShapeDtypeStruct((N_pad, hid_pad), jnp.float32),
        grid=(n_steps, N_pad // tm, N_pad // tk),
        in_specs=[
            # h is only consumed while initializing z0 (s==0, i==0); park the index on
            # block 0 afterwards so it is not re-fetched on every grid step.
            pl.BlockSpec((tk, hid_pad),
                         lambda s, i, k: (k * ((s == 0) & (i == 0)).astype(jnp.int32), 0)),
            pl.BlockSpec((tm, tk), lambda s, i, k: (i, k)),
            pl.BlockSpec(memory_space=pltpu.MemorySpace.SMEM),
        ],
        out_specs=pl.BlockSpec((tm, hid_pad), lambda s, i, k: (i, 0)),
        scratch_shapes=[pltpu.VMEM((N_pad, hid_pad), jnp.float32),
                        pltpu.VMEM((N_pad, hid_pad), jnp.float32),
                        pltpu.VMEM((tm, hid_pad), jnp.float32)],
        compiler_params=pltpu.CompilerParams(
            dimension_semantics=("arbitrary", "arbitrary", "arbitrary"),
            vmem_limit_bytes=_VMEM_BUDGET),
    )(h, Ad, scal)


def _head_kernel(z_ref, h_ref, scal_ref, out_ref, *, n_rows, n_cols):
    out_ref[...] = _relu_standardize(z_ref[...], h_ref[...], scal_ref[2], n_rows, n_cols)


def _head(z, h, scal, *, n_rows, n_cols):
    # TODO(synk): row-tile this two-pass head if N_pad*hid_pad ever outgrows the VMEM
    #             budget (N_pad >~ 16K on v7x); whole-array is fine for any N this dense
    #             N x N parameterized model can realistically use.
    N_pad, hid_pad = z.shape
    vspec = pl.BlockSpec(memory_space=pltpu.MemorySpace.VMEM)
    return pl.pallas_call(
        functools.partial(_head_kernel, n_rows=n_rows, n_cols=n_cols),
        out_shape=jax.ShapeDtypeStruct((N_pad, hid_pad), jnp.float32),
        in_specs=[vspec, vspec, pl.BlockSpec(memory_space=pltpu.MemorySpace.SMEM)],
        out_specs=vspec,
        compiler_params=pltpu.CompilerParams(vmem_limit_bytes=_VMEM_BUDGET),
    )(z, h, scal)


# ----------------------------------------------------------------------------
# Full forward.
# ----------------------------------------------------------------------------
def scdgn1_forward(knn, adj, a_dense, w1, w2, W0, b0, W1, b1,
                   alpha, norm_factor, n_euler_steps):
    """SCDGN1.forward (eval mode). knn = X, adj = A, a_dense = densified
    row-normalized (edge_index, edge_weight) adjacency used by the ODE."""
    f32 = jnp.float32
    N = knn.shape[0]
    hid = W0.shape[0]
    N_pad = _round_up(N, 128)
    hid_pad = _round_up(hid, 128)

    # lane-dense zero padding (feature axis -> multiples of 128 lanes)
    Ap = _pad2(adj, N_pad, N_pad)
    Xp = _pad2(knn, N_pad, N_pad)
    w1p = _pad2(w1, N_pad, N_pad)
    w2p = _pad2(w2, N_pad, N_pad)
    Adp = _pad2(a_dense, N_pad, N_pad)    # TODO(synk): keep sparse (gather spmm) for very sparse graphs
    W0Tp = _pad2(W0.T, N_pad, hid_pad)
    W1Tp = _pad2(W1.T, hid_pad, hid_pad)
    b0p = _pad2(b0.reshape(1, -1), 1, hid_pad)
    b1p = _pad2(b1.reshape(1, -1), 1, hid_pad)

    alpha = jnp.asarray(alpha, f32)
    scal_vec = jnp.stack([alpha, 1.0 - alpha, jnp.asarray(norm_factor, f32)])   # (3,)

    # Fully fused single pallas_call whenever the working set fits the VMEM budget
    # (the shipped config is ~1 MiB); otherwise the tiled multi-kernel pipeline.
    fused_bytes = (9 * N_pad * N_pad + 6 * N_pad * hid_pad) * 4
    if fused_bytes <= _VMEM_BUDGET:
        scal_rows = scal_vec[:, None] * jnp.ones((1, hid_pad), f32)   # lane-broadcast rows
        out = _fused_forward(Ap, Xp, w1p, w2p, Adp, W0Tp, b0p, W1Tp, b1p, scal_rows,
                             n_steps=n_euler_steps, n_rows=N, n_cols=hid)
    else:
        cd = jnp.bfloat16                      # bf16 MXU feed / HBM traffic, f32 accumulate
        ATb = jnp.transpose(Ap).astype(cd)     # pre-transpose once: keeps the NN MXU path
        Ab = Ap.astype(cd)
        T = _tiled_matmul(Ab, w1p.astype(cd), out_dtype=cd)          # A @ w1
        T = _tiled_matmul(T, ATb, out_dtype=cd)                      # .. @ A^T
        T = _tiled_matmul(T, w2p.astype(cd), out_dtype=cd)           # .. @ w2
        H = _tiled_matmul(T, Xp.astype(cd), out_dtype=cd)            # .. @ X
        h = _embed_extract(H, W0Tp.astype(cd), b0p, W1Tp.astype(cd), b1p,
                           n_valid_rows=N)                           # H H^T -> norm -> MLP
        z = _diffuse(h, Adp.astype(cd), scal_vec, n_steps=n_euler_steps)
        out = _head(z, h, scal_vec, n_rows=N, n_cols=hid)
    return out[:N, :hid]


# Pure-JAX reference for correctness checking.
def _reference(knn, adj, a_dense, w1, w2, W0, b0, W1, b1, alpha, norm_factor, steps):
    H = (adj @ w1) @ adj.T
    H = (H @ w2) @ knn
    embed = H @ H.T
    nrm = jnp.sqrt(jnp.sum(embed * embed, axis=1, keepdims=True))
    embed = embed / jnp.maximum(nrm, 1e-12)
    h = embed @ W0.T + b0
    h = h @ W1.T + b1
    z = h
    for _ in range(steps):
        z = z + alpha * (a_dense @ z - z)
    zz = jnp.maximum(norm_factor * z + h, 0.0)
    var = jnp.sum((zz - jnp.mean(zz)) ** 2) / (zz.size - 1)
    return (zz - jnp.mean(zz, axis=0, keepdims=True)) / jnp.sqrt(var)


if __name__ == "__main__":
    # args: n_layers=2, hid_dim=32, dropout=0.5 (eval), time=1, method='euler'
    N, hid = 16, 32
    time_steps = 1

    key = jax.random.PRNGKey(0)
    k1, k2, k3, k4 = jax.random.split(key, 4)

    knn = jax.random.normal(k1, (N, N), dtype=jnp.float32)
    adj = jax.random.uniform(k2, (N, N), dtype=jnp.float32)
    adj = 0.5 * (adj + adj.T)
    norm_factor = 0.5

    # edge_index / edge_weight: ring graph with self loops, row-normalized -> dense A
    idx = jnp.arange(N)
    src = jnp.concatenate([idx, idx, idx])
    dst = jnp.concatenate([idx, (idx + 1) % N, (idx - 1) % N])
    a_dense = jnp.zeros((N, N), jnp.float32).at[src, dst].add(1.0 / 3.0)

    # parameters (deterministic init mirroring the module's __init__)
    w1 = jnp.eye(N, dtype=jnp.float32)                               # AGCN.w1 = I
    w2 = jnp.eye(N, dtype=jnp.float32)                               # AGCN.w2 = I
    W0 = jax.random.normal(k3, (hid, N), dtype=jnp.float32) * jnp.sqrt(2.0 / N)
    b0 = jnp.zeros((hid,), jnp.float32)
    W1 = jax.random.normal(k4, (hid, hid), dtype=jnp.float32) * jnp.sqrt(2.0 / hid)
    b1 = jnp.zeros((hid,), jnp.float32)
    alpha = float(jax.nn.sigmoid(0.0))                               # alpha_train init = 0.0

    fwd = jax.jit(functools.partial(scdgn1_forward, n_euler_steps=time_steps))
    out = fwd(knn, adj, a_dense, w1, w2, W0, b0, W1, b1, alpha, norm_factor)
    jax.block_until_ready(out)

    ref = _reference(knn, adj, a_dense, w1, w2, W0, b0, W1, b1,
                     alpha, norm_factor, time_steps)
    err = float(jnp.max(jnp.abs(out - ref)))
    assert out.shape == (N, hid)
    assert bool(jnp.all(jnp.isfinite(out)))
    assert err < 0.3, f"kernel vs reference max abs err {err}"
    print("KERNEL_OK")
</pallas_src>

<mosaic_0001>
module attributes {stable_mosaic.version = 11 : i64} {
  func.func @_fused_kernel(%arg0: memref<128x128xf32, #tpu.memory_space<vmem>>, %arg1: memref<128x128xf32, #tpu.memory_space<vmem>>, %arg2: memref<128x128xf32, #tpu.memory_space<vmem>>, %arg3: memref<128x128xf32, #tpu.memory_space<vmem>>, %arg4: memref<128x128xf32, #tpu.memory_space<vmem>>, %arg5: memref<128x128xf32, #tpu.memory_space<vmem>>, %arg6: memref<1x128xf32, #tpu.memory_space<vmem>>, %arg7: memref<128x128xf32, #tpu.memory_space<vmem>>, %arg8: memref<1x128xf32, #tpu.memory_space<vmem>>, %arg9: memref<3x128xf32, #tpu.memory_space<vmem>>, %arg10: memref<128x128xf32, #tpu.memory_space<vmem>>) attributes {dimension_semantics = [], scalar_prefetch = 0 : i64, scratch_operands = 0 : i64, tpu.core_type = #tpu.core_type<tc>} {
    %c0 = arith.constant 0 : index
    %c0_0 = arith.constant 0 : index
    %0 = vector.load %arg0[%c0, %c0_0] : memref<128x128xf32, #tpu.memory_space<vmem>>, vector<128x128xf32>
    %c0_1 = arith.constant 0 : index
    %c0_2 = arith.constant 0 : index
    %1 = vector.load %arg2[%c0_1, %c0_2] : memref<128x128xf32, #tpu.memory_space<vmem>>, vector<128x128xf32>
    %cst = arith.constant dense<0.000000e+00> : vector<128x128xf32>
    %2 = tpu.matmul %0, %1, %cst {dimension_numbers = #tpu.dot_dimension_numbers<[1], [0], [0], [1], [0, 0, 1, 1], [], []>} : vector<128x128xf32>, vector<128x128xf32>, vector<128x128xf32> -> vector<128x128xf32>
    %cst_3 = arith.constant dense<0.000000e+00> : vector<128x128xf32>
    %3 = tpu.matmul %2, %0, %cst_3 {dimension_numbers = #tpu.dot_dimension_numbers<[1], [1], [0], [0], [0, 0, 1, 0], [], []>} : vector<128x128xf32>, vector<128x128xf32>, vector<128x128xf32> -> vector<128x128xf32>
    %c0_4 = arith.constant 0 : index
    %c0_5 = arith.constant 0 : index
    %4 = vector.load %arg3[%c0_4, %c0_5] : memref<128x128xf32, #tpu.memory_space<vmem>>, vector<128x128xf32>
    %cst_6 = arith.constant dense<0.000000e+00> : vector<128x128xf32>
    %5 = tpu.matmul %3, %4, %cst_6 {dimension_numbers = #tpu.dot_dimension_numbers<[1], [0], [0], [1], [0, 0, 1, 1], [], []>} : vector<128x128xf32>, vector<128x128xf32>, vector<128x128xf32> -> vector<128x128xf32>
    %c0_7 = arith.constant 0 : index
    %c0_8 = arith.constant 0 : index
    %6 = vector.load %arg1[%c0_7, %c0_8] : memref<128x128xf32, #tpu.memory_space<vmem>>, vector<128x128xf32>
    %cst_9 = arith.constant dense<0.000000e+00> : vector<128x128xf32>
    %7 = tpu.matmul %5, %6, %cst_9 {dimension_numbers = #tpu.dot_dimension_numbers<[1], [0], [0], [1], [0, 0, 1, 1], [], []>} : vector<128x128xf32>, vector<128x128xf32>, vector<128x128xf32> -> vector<128x128xf32>
    %cst_10 = arith.constant dense<0.000000e+00> : vector<128x128xf32>
    %8 = tpu.matmul %7, %7, %cst_10 {dimension_numbers = #tpu.dot_dimension_numbers<[1], [1], [0], [0], [0, 0, 1, 0], [], []>} : vector<128x128xf32>, vector<128x128xf32>, vector<128x128xf32> -> vector<128x128xf32>
    %9 = arith.mulf %8, %8 : vector<128x128xf32>
    %cst_11 = arith.constant dense<0.000000e+00> : vector<128xf32>
    %10 = vector.multi_reduction <add>, %9, %cst_11 [1] : vector<128x128xf32> to vector<128xf32>
    %11 = vector.shape_cast %10 : vector<128xf32> to vector<128x1xf32>
    %cst_12 = arith.constant 1.000000e-24 : f32
    %12 = vector.broadcast %cst_12 : f32 to vector<128x1xf32>
    %13 = arith.maximumf %11, %12 : vector<128x1xf32>
    %14 = math.rsqrt %13 : vector<128x1xf32>
    %15 = vector.broadcast %14 : vector<128x1xf32> to vector<128x128xf32>
    %16 = arith.mulf %8, %15 : vector<128x128xf32>
    %c0_13 = arith.constant 0 : index
    %c0_14 = arith.constant 0 : index
    %17 = vector.load %arg5[%c0_13, %c0_14] : memref<128x128xf32, #tpu.memory_space<vmem>>, vector<128x128xf32>
    %cst_15 = arith.constant dense<0.000000e+00> : vector<128x128xf32>
    %18 = tpu.matmul %16, %17, %cst_15 {dimension_numbers = #tpu.dot_dimension_numbers<[1], [0], [0], [1], [0, 0, 1, 1], [], []>} : vector<128x128xf32>, vector<128x128xf32>, vector<128x128xf32> -> vector<128x128xf32>
    %c0_16 = arith.constant 0 : index
    %c0_17 = arith.constant 0 : index
    %19 = vector.load %arg6[%c0_16, %c0_17] : memref<1x128xf32, #tpu.memory_space<vmem>>, vector<1x128xf32>
    %20 = vector.broadcast %19 : vector<1x128xf32> to vector<128x128xf32>
    %21 = arith.addf %18, %20 : vector<128x128xf32>
    %c0_18 = arith.constant 0 : index
    %c0_19 = arith.constant 0 : index
    %22 = vector.load %arg7[%c0_18, %c0_19] : memref<128x128xf32, #tpu.memory_space<vmem>>, vector<128x128xf32>
    %cst_20 = arith.constant dense<0.000000e+00> : vector<128x128xf32>
    %23 = tpu.matmul %21, %22, %cst_20 {dimension_numbers = #tpu.dot_dimension_numbers<[1], [0], [0], [1], [0, 0, 1, 1], [], []>} : vector<128x128xf32>, vector<128x128xf32>, vector<128x128xf32> -> vector<128x128xf32>
    %c0_21 = arith.constant 0 : index
    %c0_22 = arith.constant 0 : index
    %24 = vector.load %arg8[%c0_21, %c0_22] : memref<1x128xf32, #tpu.memory_space<vmem>>, vector<1x128xf32>
    %25 = vector.broadcast %24 : vector<1x128xf32> to vector<128x128xf32>
    %26 = arith.addf %23, %25 : vector<128x128xf32>
    %27 = tpu.iota {dimensions = array<i32: 0>} : vector<128x128xi32>
    %c16_i32 = arith.constant 16 : i32
    %28 = vector.broadcast %c16_i32 : i32 to vector<128x128xi32>
    %29 = arith.cmpi slt, %27, %28 : vector<128x128xi32>
    %cst_23 = arith.constant 0.000000e+00 : f32
    %30 = vector.broadcast %cst_23 : f32 to vector<128x128xf32>
    %31 = arith.select %29, %26, %30 : vector<128x128xi1>, vector<128x128xf32>
    %c0_24 = arith.constant 0 : index
    %c0_25 = arith.constant 0 : index
    %32 = vector.load %arg9[%c0_24, %c0_25] : memref<3x128xf32, #tpu.memory_space<vmem>>, vector<3x128xf32>
    %33 = vector.extract_strided_slice %32 {offsets = [0, 0], sizes = [1, 128], strides = [1, 1]} : vector<3x128xf32> to vector<1x128xf32>
    %34 = vector.extract_strided_slice %32 {offsets = [1, 0], sizes = [1, 128], strides = [1, 1]} : vector<3x128xf32> to vector<1x128xf32>
    %35 = vector.extract_strided_slice %32 {offsets = [2, 0], sizes = [1, 128], strides = [1, 1]} : vector<3x128xf32> to vector<1x128xf32>
    %c0_26 = arith.constant 0 : index
    %c0_27 = arith.constant 0 : index
    %36 = vector.load %arg4[%c0_26, %c0_27] : memref<128x128xf32, #tpu.memory_space<vmem>>, vector<128x128xf32>
    %c0_i32 = arith.constant 0 : i32
    %37 = vector.broadcast %34 : vector<1x128xf32> to vector<128x128xf32>
    %38 = arith.mulf %37, %31 : vector<128x128xf32>
    %cst_28 = arith.constant dense<0.000000e+00> : vector<128x128xf32>
    %39 = tpu.matmul %36, %31, %cst_28 {dimension_numbers = #tpu.dot_dimension_numbers<[1], [0], [0], [1], [0, 0, 1, 1], [], []>} : vector<128x128xf32>, vector<128x128xf32>, vector<128x128xf32> -> vector<128x128xf32>
    %40 = vector.broadcast %33 : vector<1x128xf32> to vector<128x128xf32>
    %41 = arith.mulf %40, %39 : vector<128x128xf32>
    %42 = arith.addf %38, %41 : vector<128x128xf32>
    %43 = vector.broadcast %35 : vector<1x128xf32> to vector<128x128xf32>
    %44 = arith.mulf %43, %42 : vector<128x128xf32>
    %45 = arith.addf %44, %31 : vector<128x128xf32>
    %cst_29 = arith.constant 0.000000e+00 : f32
    %46 = vector.broadcast %cst_29 : f32 to vector<128x128xf32>
    %47 = arith.maximumf %45, %46 : vector<128x128xf32>
    %48 = tpu.iota {dimensions = array<i32: 0>} : vector<128x128xi32>
    %49 = tpu.iota {dimensions = array<i32: 1>} : vector<128x128xi32>
    %c16_i32_30 = arith.constant 16 : i32
    %50 = vector.broadcast %c16_i32_30 : i32 to vector<128x128xi32>
    %51 = arith.cmpi slt, %48, %50 : vector<128x128xi32>
    %c32_i32 = arith.constant 32 : i32
    %52 = vector.broadcast %c32_i32 : i32 to vector<128x128xi32>
    %53 = arith.cmpi slt, %49, %52 : vector<128x128xi32>
    %54 = arith.andi %51, %53 : vector<128x128xi1>
    %cst_31 = arith.constant 0.000000e+00 : f32
    %55 = vector.broadcast %cst_31 : f32 to vector<128x128xf32>
    %56 = arith.select %54, %47, %55 : vector<128x128xi1>, vector<128x128xf32>
    %cst_32 = arith.constant dense<0.000000e+00> : vector<128xf32>
    %57 = vector.multi_reduction <add>, %56, %cst_32 [0] : vector<128x128xf32> to vector<128xf32>
    %58 = vector.shape_cast %57 : vector<128xf32> to vector<1x128xf32>
    %cst_33 = arith.constant 6.250000e-02 : f32
    %59 = vector.broadcast %cst_33 : f32 to vector<1x128xf32>
    %60 = arith.mulf %58, %59 : vector<1x128xf32>
    %61 = vector.shape_cast %58 : vector<1x128xf32> to vector<1x1x128xf32>
    %cst_34 = arith.constant dense<0.000000e+00> : vector<1xf32>
    %62 = vector.multi_reduction <add>, %61, %cst_34 [1, 2] : vector<1x1x128xf32> to vector<1xf32>
    %63 = vector.shape_cast %62 : vector<1xf32> to vector<1x1x1xf32>
    %64 = vector.extract %63[0, 0, 0] : f32 from vector<1x1x1xf32>
    %cst_35 = arith.constant 0.001953125 : f32
    %65 = arith.mulf %64, %cst_35 : f32
    %66 = vector.broadcast %65 : f32 to vector<128x128xf32>
    %67 = arith.subf %56, %66 : vector<128x128xf32>
    %cst_36 = arith.constant 0.000000e+00 : f32
    %68 = vector.broadcast %cst_36 : f32 to vector<128x128xf32>
    %69 = arith.select %54, %67, %68 : vector<128x128xi1>, vector<128x128xf32>
    %70 = arith.mulf %69, %69 : vector<128x128xf32>
    %71 = vector.shape_cast %70 : vector<128x128xf32> to vector<1x128x128xf32>
    %cst_37 = arith.constant dense<0.000000e+00> : vector<1xf32>
    %72 = vector.multi_reduction <add>, %71, %cst_37 [1, 2] : vector<1x128x128xf32> to vector<1xf32>
    %73 = vector.shape_cast %72 : vector<1xf32> to vector<1x1x1xf32>
    %74 = vector.extract %73[0, 0, 0] : f32 from vector<1x1x1xf32>
    %cst_38 = arith.constant 0.00195694715 : f32
    %75 = arith.mulf %74, %cst_38 : f32
    %76 = vector.broadcast %60 : vector<1x128xf32> to vector<128x128xf32>
    %77 = arith.subf %56, %76 : vector<128x128xf32>
    %78 = math.rsqrt %75 : f32
    %79 = vector.broadcast %78 : f32 to vector<128x128xf32>
    %80 = arith.mulf %77, %79 : vector<128x128xf32>
    %cst_39 = arith.constant 0.000000e+00 : f32
    %81 = vector.broadcast %cst_39 : f32 to vector<128x128xf32>
    %82 = arith.select %54, %80, %81 : vector<128x128xi1>, vector<128x128xf32>
    %c0_40 = arith.constant 0 : index
    %c0_41 = arith.constant 0 : index
    %83 = vector.load %arg10[%c0_40, %c0_41] : memref<128x128xf32, #tpu.memory_space<vmem>>, vector<128x128xf32>
    tpu.vector_store %arg10[%c0_40, %c0_41], %82 {strides = array<i32>} : memref<128x128xf32, #tpu.memory_space<vmem>>, vector<128x128xf32>,
    return
  }
}

</mosaic_0001>

<llo_original>
// kernel: mul.5
$region0: #{mul.5}
  #allocation0 [shape = 's32[1]{0}', space=sflag, size = 0x4, scoped, tag = 'scoped memory for mul.5']
  %s0 = inlined_call_operand.vmem [shape: f32[3], index: 0, kind: input, shape index: {}]
  %s1 = inlined_call_operand.vmem [shape: f32[3,128], index: 1, kind: output, shape index: {}]
  // Predicated region
  $region2: #{mul.5} parent=0 // pred_check
    _
  $region3: #{mul.5} parent=0 // pred_check_branch
    %3 = sbr.rel (0) target = $region5
  $region4: #{mul.5} parent=0 // pred_region
    _
  $region5: #{mul.5} parent=0 // pred_fallthru
    _
  %v4 = vld [vmem:[%s0] ss:$0 sm:$0xff]
  %6 = vbcast.lane.b32.xlu0 %v4, 256
  %v7 = vpop.permute.xlu0 %6
  %8 = vst [vmem:[%s1] sm:$0xf] %v7

// kernel: scdgn1_forward.1
$region0: #{scdgn1_forward.1}
  #allocation0 [shape = 'u32[]', space=smem, size = 0x4, offset = 0x4, fixed_abs, tag = 'smem constant byte address 0x4 - core index']
  #allocation1 [shape = 'u32[144,128]{1,0:T(1,128)}', space=vmem, size = 0x12000, scoped, tag = 'internal scratch']
  %s0 = inlined_call_operand.vmem [shape: f32[128,128], index: 0, kind: input, shape index: {}]
  %s1 = inlined_call_operand.vmem [shape: f32[128,128], index: 1, kind: input, shape index: {}]
  %s2 = inlined_call_operand.vmem [shape: f32[128,128], index: 2, kind: input, shape index: {}]
  %s3 = inlined_call_operand.vmem [shape: f32[128,128], index: 3, kind: input, shape index: {}]
  %s4 = inlined_call_operand.vmem [shape: f32[128,128], index: 4, kind: input, shape index: {}]
  %s5 = inlined_call_operand.vmem [shape: f32[128,128], index: 5, kind: input, shape index: {}]
  %s6 = inlined_call_operand.vmem [shape: f32[1,128], index: 6, kind: input, shape index: {}]
  %s7 = inlined_call_operand.vmem [shape: f32[128,128], index: 7, kind: input, shape index: {}]
  %s8 = inlined_call_operand.vmem [shape: f32[1,128], index: 8, kind: input, shape index: {}]
  %s9 = inlined_call_operand.vmem [shape: f32[3,128], index: 9, kind: input, shape index: {}]
  %s10 = inlined_call_operand.vmem [shape: f32[128,128], index: 10, kind: output, shape index: {}]
  %s11 = sld [smem:[#allocation0]]
  $region50: #{scdgn1_forward.1} parent=0
    _
  %s13 = ssub.s32 1, %s11
  %s14 = scalar_select 0, %s13, %s11
  // Predicated region
  $region2: #{scdgn1_forward.1} parent=0 // pred_check
    _
  $region3: #{scdgn1_forward.1} parent=0 // pred_check_branch
    %16 = sbr.rel (0) target = $region5
  $region4: #{scdgn1_forward.1} parent=0 // pred_region
    _
  $region5: #{scdgn1_forward.1} parent=0 // pred_fallthru
    _
  // Predicated region
  $region6: #{scdgn1_forward.1} parent=0 // pred_check
    _
  $region7: #{scdgn1_forward.1} parent=0 // pred_check_branch
    %18 = sbr.rel (0) target = $region9
  $region8: #{scdgn1_forward.1} parent=0 // pred_region
    _
  $region9: #{scdgn1_forward.1} parent=0 // pred_fallthru
    _
  // Predicated region
  $region10: #{scdgn1_forward.1} parent=0 // pred_check
    _
  $region11: #{scdgn1_forward.1} parent=0 // pred_check_branch
    %20 = sbr.rel (0) target = $region13
  $region12: #{scdgn1_forward.1} parent=0 // pred_region
    _
  $region13: #{scdgn1_forward.1} parent=0 // pred_fallthru
    _
  // Predicated region
  $region14: #{scdgn1_forward.1} parent=0 // pred_check
    _
  $region15: #{scdgn1_forward.1} parent=0 // pred_check_branch
    %22 = sbr.rel (0) target = $region17
  $region16: #{scdgn1_forward.1} parent=0 // pred_region
    _
  $region17: #{scdgn1_forward.1} parent=0 // pred_fallthru
    _
  // Predicated region
  $region18: #{scdgn1_forward.1} parent=0 // pred_check
    _
  $region19: #{scdgn1_forward.1} parent=0 // pred_check_branch
    %24 = sbr.rel (0) target = $region21
  $region20: #{scdgn1_forward.1} parent=0 // pred_region
    _
  $region21: #{scdgn1_forward.1} parent=0 // pred_fallthru
    _
  // Predicated region
  $region22: #{scdgn1_forward.1} parent=0 // pred_check
    _
  $region23: #{scdgn1_forward.1} parent=0 // pred_check_branch
    %26 = sbr.rel (0) target = $region25
  $region24: #{scdgn1_forward.1} parent=0 // pred_region
    _
  $region25: #{scdgn1_forward.1} parent=0 // pred_fallthru
    _
  // Predicated region
  $region26: #{scdgn1_forward.1} parent=0 // pred_check
    _
  $region27: #{scdgn1_forward.1} parent=0 // pred_check_branch
    %28 = sbr.rel (0) target = $region29
  $region28: #{scdgn1_forward.1} parent=0 // pred_region
    _
  $region29: #{scdgn1_forward.1} parent=0 // pred_fallthru
    _
  // Predicated region
  $region30: #{scdgn1_forward.1} parent=0 // pred_check
    _
  $region31: #{scdgn1_forward.1} parent=0 // pred_check_branch
    %30 = sbr.rel (0) target = $region33
  $region32: #{scdgn1_forward.1} parent=0 // pred_region
    _
  $region33: #{scdgn1_forward.1} parent=0 // pred_fallthru
    _
  // Predicated region
  $region34: #{scdgn1_forward.1} parent=0 // pred_check
    _
  $region35: #{scdgn1_forward.1} parent=0 // pred_check_branch
    %32 = sbr.rel (0) target = $region37
  $region36: #{scdgn1_forward.1} parent=0 // pred_region
    _
  $region37: #{scdgn1_forward.1} parent=0 // pred_fallthru
    _
  // Predicated region
  $region38: #{scdgn1_forward.1} parent=0 // pred_check
    _
  $region39: #{scdgn1_forward.1} parent=0 // pred_check_branch
    %34 = sbr.rel (0) target = $region41
  $region40: #{scdgn1_forward.1} parent=0 // pred_region
    _
  $region41: #{scdgn1_forward.1} parent=0 // pred_fallthru
    _
  %v35 = vld [vmem:[%s0] sm:$0xff]
  %v36 = vld [vmem:[%s0 + $0x8] sm:$0xff]
  %v37 = vld [vmem:[%s0 + $0x10] sm:$0xff]
  %v38 = vld [vmem:[%s0 + $0x18] sm:$0xff]
  %v39 = vld [vmem:[%s0 + $0x20] sm:$0xff]
  %v40 = vld [vmem:[%s0 + $0x28] sm:$0xff]
  %v41 = vld [vmem:[%s0 + $0x30] sm:$0xff]
  %v42 = vld [vmem:[%s0 + $0x38] sm:$0xff]
  %v43 = vld [vmem:[%s0 + $0x40] sm:$0xff]
  %v44 = vld [vmem:[%s0 + $0x48] sm:$0xff]
  %v45 = vld [vmem:[%s0 + $0x50] sm:$0xff]
  %v46 = vld [vmem:[%s0 + $0x58] sm:$0xff]
  %v47 = vld [vmem:[%s0 + $0x60] sm:$0xff]
  %v48 = vld [vmem:[%s0 + $0x68] sm:$0xff]
  %v49 = vld [vmem:[%s0 + $0x70] sm:$0xff]
  %v50 = vld [vmem:[%s0 + $0x78] sm:$0xff]
  %v51 = vld [vmem:[%s2] sm:$0xff]
  %v52 = vld [vmem:[%s2 + $0x8] sm:$0xff]
  %v53 = vld [vmem:[%s2 + $0x10] sm:$0xff]
  %v54 = vld [vmem:[%s2 + $0x18] sm:$0xff]
  %v55 = vld [vmem:[%s2 + $0x20] sm:$0xff]
  %v56 = vld [vmem:[%s2 + $0x28] sm:$0xff]
  %v57 = vld [vmem:[%s2 + $0x30] sm:$0xff]
  %v58 = vld [vmem:[%s2 + $0x38] sm:$0xff]
  %v59 = vld [vmem:[%s2 + $0x40] sm:$0xff]
  %v60 = vld [vmem:[%s2 + $0x48] sm:$0xff]
  %v61 = vld [vmem:[%s2 + $0x50] sm:$0xff]
  %v62 = vld [vmem:[%s2 + $0x58] sm:$0xff]
  %v63 = vld [vmem:[%s2 + $0x60] sm:$0xff]
  %v64 = vld [vmem:[%s2 + $0x68] sm:$0xff]
  %v65 = vld [vmem:[%s2 + $0x70] sm:$0xff]
  %v66 = vld [vmem:[%s2 + $0x78] sm:$0xff]
  %67 = vmatprep.subr.mxu0 0.0
  %68 = vmatpush1.msra.mxu0 %v51
  %69 = vmatprep.subr.mxu0 0.0
  %70 = vmatpush1.msra.mxu0 %v52
  %71 = vmatprep.subr.mxu0 0.0
  %72 = vmatpush1.msra.mxu0 %v53
  %73 = vmatprep.subr.mxu0 0.0
  %74 = vmatpush1.msra.mxu0 %v54
  %75 = vmatprep.subr.mxu0 0.0
  %76 = vmatpush1.msra.mxu0 %v55
  %77 = vmatprep.subr.mxu0 0.0
  %78 = vmatpush1.msra.mxu0 %v56
  %79 = vmatprep.subr.mxu0 0.0
  %80 = vmatpush1.msra.mxu0 %v57
  %81 = vmatprep.subr.mxu0 0.0
  %82 = vmatpush1.msra.mxu0 %v58
  %83 = vmatprep.subr.mxu0 0.0
  %84 = vmatpush1.msra.mxu0 %v59
  %85 = vmatprep.subr.mxu0 0.0
  %86 = vmatpush1.msra.mxu0 %v60
  %87 = vmatprep.subr.mxu0 0.0
  %88 = vmatpush1.msra.mxu0 %v61
  %89 = vmatprep.subr.mxu0 0.0
  %90 = vmatpush1.msra.mxu0 %v62
  %91 = vmatprep.subr.mxu0 0.0
  %92 = vmatpush1.msra.mxu0 %v63
  %93 = vmatprep.subr.mxu0 0.0
  %94 = vmatpush1.msra.mxu0 %v64
  %95 = vmatprep.subr.mxu0 0.0
  %96 = vmatpush1.msra.mxu0 %v65
  %97 = vmatprep.subr.mxu0 0.0
  %98 = vmatpush1.msra.mxu0 %v66
  %99 = vmatprep.subr.mxu0 0.0
  %100 = vmatpush1.msra.mxu0 0.0
  %101 = vmatprep.subr.mxu0 0.0
  %102 = vmatpush1.msra.mxu0 0.0
  %103 = vmatprep.subr.mxu0 0.0
  %104 = vmatpush1.msra.mxu0 0.0
  %105 = vmatprep.subr.mxu0 0.0
  %106 = vmatpush1.msra.mxu0 0.0
  %107 = vmatprep.subr.mxu0 0.0
  %108 = vmatpush1.msra.mxu0 0.0
  %109 = vmatprep.subr.mxu0 0.0
  %110 = vmatpush1.msra.mxu0 0.0
  %111 = vmatprep.subr.mxu0 0.0
  %112 = vmatpush1.msra.mxu0 0.0
  %113 = vmatprep.subr.mxu0 0.0
  %114 = vmatpush1.msra.mxu0 0.0
  %115 = vmatprep.subr.mxu0 0.0
  %116 = vmatpush1.msra.mxu0 0.0
  %117 = vmatprep.subr.mxu0 0.0
  %118 = vmatpush1.msra.mxu0 0.0
  %119 = vmatprep.subr.mxu0 0.0
  %120 = vmatpush1.msra.mxu0 0.0
  %121 = vmatprep.subr.mxu0 0.0
  %122 = vmatpush1.msra.mxu0 0.0
  %123 = vmatprep.subr.mxu0 0.0
  %124 = vmatpush1.msra.mxu0 0.0
  %125 = vmatprep.subr.mxu0 0.0
  %126 = vmatpush1.msra.mxu0 0.0
  %127 = vmatprep.subr.mxu0 0.0
  %128 = vmatpush1.msra.mxu0 0.0
  %129 = vmatprep.subr.mxu0 0.0
  %130 = vmatpush1.msra.mxu0 0.0
  %131 = vmatprep.mubr.f32.mxu0 0.0
  %132 = vmatmul.mubr.f32.gmra.mrb[0].mxu0 %v35
  %v133 = vpop.f32.mrb[0].mxu0
  %v134 = vadd.f32 0.0, %v133
  %v135 = vpop.f32.mrb[0].mxu0
  %136 = vmatprep.mubr.f32.mxu0 0.0
  %137 = vmatmul.mubr.f32.gmra.mrb[0].mxu0 %v36
  %v138 = vpop.f32.mrb[0].mxu0
  %v139 = vadd.f32 0.0, %v138
  %v140 = vpop.f32.mrb[0].mxu0
  %141 = vmatprep.mubr.f32.mxu0 0.0
  %142 = vmatmul.mubr.f32.gmra.mrb[0].mxu0 %v37
  %v143 = vpop.f32.mrb[0].mxu0
  %v144 = vadd.f32 0.0, %v143
  %v145 = vpop.f32.mrb[0].mxu0
  %146 = vmatprep.mubr.f32.mxu0 0.0
  %147 = vmatmul.mubr.f32.gmra.mrb[0].mxu0 %v38
  %v148 = vpop.f32.mrb[0].mxu0
  %v149 = vadd.f32 0.0, %v148
  %v150 = vpop.f32.mrb[0].mxu0
  %151 = vmatprep.mubr.f32.mxu0 0.0
  %152 = vmatmul.mubr.f32.gmra.mrb[0].mxu0 %v39
  %v153 = vpop.f32.mrb[0].mxu0
  %v154 = vadd.f32 0.0, %v153
  %v155 = vpop.f32.mrb[0].mxu0
  %156 = vmatprep.mubr.f32.mxu0 0.0
  %157 = vmatmul.mubr.f32.gmra.mrb[0].mxu0 %v40
  %v158 = vpop.f32.mrb[0].mxu0
  %v159 = vadd.f32 0.0, %v158
  %v160 = vpop.f32.mrb[0].mxu0
  %161 = vmatprep.mubr.f32.mxu0 0.0
  %162 = vmatmul.mubr.f32.gmra.mrb[0].mxu0 %v41
  %v163 = vpop.f32.mrb[0].mxu0
  %v164 = vadd.f32 0.0, %v163
  %v165 = vpop.f32.mrb[0].mxu0
  %166 = vmatprep.mubr.f32.mxu0 0.0
  %167 = vmatmul.mubr.f32.gmra.mrb[0].mxu0 %v42
  %v168 = vpop.f32.mrb[0].mxu0
  %v169 = vadd.f32 0.0, %v168
  %v170 = vpop.f32.mrb[0].mxu0
  %171 = vmatprep.mubr.f32.mxu0 0.0
  %172 = vmatmul.mubr.f32.gmra.mrb[0].mxu0 %v43
  %v173 = vpop.f32.mrb[0].mxu0
  %v174 = vadd.f32 0.0, %v173
  %v175 = vpop.f32.mrb[0].mxu0
  %176 = vmatprep.mubr.f32.mxu0 0.0
  %177 = vmatmul.mubr.f32.gmra.mrb[0].mxu0 %v44
  %v178 = vpop.f32.mrb[0].mxu0
  %v179 = vadd.f32 0.0, %v178
  %v180 = vpop.f32.mrb[0].mxu0
  %181 = vmatprep.mubr.f32.mxu0 0.0
  %182 = vmatmul.mubr.f32.gmra.mrb[0].mxu0 %v45
  %v183 = vpop.f32.mrb[0].mxu0
  %v184 = vadd.f32 0.0, %v183
  %v185 = vpop.f32.mrb[0].mxu0
  %186 = vmatprep.mubr.f32.mxu0 0.0
  %187 = vmatmul.mubr.f32.gmra.mrb[0].mxu0 %v46
  %v188 = vpop.f32.mrb[0].mxu0
  %v189 = vadd.f32 0.0, %v188
  %v190 = vpop.f32.mrb[0].mxu0
  %191 = vmatprep.mubr.f32.mxu0 0.0
  %192 = vmatmul.mubr.f32.gmra.mrb[0].mxu0 %v47
  %v193 = vpop.f32.mrb[0].mxu0
  %v194 = vadd.f32 0.0, %v193
  %v195 = vpop.f32.mrb[0].mxu0
  %196 = vmatprep.mubr.f32.mxu0 0.0
  %197 = vmatmul.mubr.f32.gmra.mrb[0].mxu0 %v48
  %v198 = vpop.f32.mrb[0].mxu0
  %v199 = vadd.f32 0.0, %v198
  %v200 = vpop.f32.mrb[0].mxu0
  %201 = vmatprep.mubr.f32.mxu0 0.0
  %202 = vmatmul.mubr.f32.gmra.mrb[0].mxu0 %v49
  %v203 = vpop.f32.mrb[0].mxu0
  %v204 = vadd.f32 0.0, %v203
  %v205 = vpop.f32.mrb[0].mxu0
  %206 = vmatprep.mubr.f32.mxu0 0.0
  %207 = vmatmul.mubr.f32.gmra.mrb[0].mxu0 %v50
  %v208 = vpop.f32.mrb[0].mxu0
  %v209 = vadd.f32 0.0, %v208
  %v210 = vpop.f32.mrb[0].mxu0
  %211 = vdwg.mxu0
  %212 = vmatprep.subr.mxu0 0.0
  %213 = vmatpush1.xpose.msra.mxu0 %v35
  %214 = vmatprep.subr.mxu0 0.0
  %215 = vmatpush1.xpose.msra.mxu0 %v36
  %216 = vmatprep.subr.mxu0 0.0
  %217 = vmatpush1.xpose.msra.mxu0 %v37
  %218 = vmatprep.subr.mxu0 0.0
  %219 = vmatpush1.xpose.msra.mxu0 %v38
  %220 = vmatprep.subr.mxu0 0.0
  %221 = vmatpush1.xpose.msra.mxu0 %v39
  %222 = vmatprep.subr.mxu0 0.0
  %223 = vmatpush1.xpose.msra.mxu0 %v40
  %224 = vmatprep.subr.mxu0 0.0
  %225 = vmatpush1.xpose.msra.mxu0 %v41
  %226 = vmatprep.subr.mxu0 0.0
  %227 = vmatpush1.xpose.msra.mxu0 %v42
  %228 = vmatprep.subr.mxu0 0.0
  %229 = vmatpush1.xpose.msra.mxu0 %v43
  %230 = vmatprep.subr.mxu0 0.0
  %231 = vmatpush1.xpose.msra.mxu0 %v44
  %232 = vmatprep.subr.mxu0 0.0
  %233 = vmatpush1.xpose.msra.mxu0 %v45
  %234 = vmatprep.subr.mxu0 0.0
  %235 = vmatpush1.xpose.msra.mxu0 %v46
  %236 = vmatprep.subr.mxu0 0.0
  %237 = vmatpush1.xpose.msra.mxu0 %v47
  %238 = vmatprep.subr.mxu0 0.0
  %239 = vmatpush1.xpose.msra.mxu0 %v48
  %240 = vmatprep.subr.mxu0 0.0
  %241 = vmatpush1.xpose.msra.mxu0 %v49
  %242 = vmatprep.subr.mxu0 0.0
  %243 = vmatpush1.xpose.msra.mxu0 %v50
  %244 = vmatprep.subr.mxu0 0.0
  %245 = vmatpush1.xpose.msra.mxu0 0.0
  %246 = vmatprep.subr.mxu0 0.0
  %247 = vmatpush1.xpose.msra.mxu0 0.0
  %248 = vmatprep.subr.mxu0 0.0
  %249 = vmatpush1.xpose.msra.mxu0 0.0
  %250 = vmatprep.subr.mxu0 0.0
  %251 = vmatpush1.xpose.msra.mxu0 0.0
  %252 = vmatprep.subr.mxu0 0.0
  %253 = vmatpush1.xpose.msra.mxu0 0.0
  %254 = vmatprep.subr.mxu0 0.0
  %255 = vmatpush1.xpose.msra.mxu0 0.0
  %256 = vmatprep.subr.mxu0 0.0
  %257 = vmatpush1.xpose.msra.mxu0 0.0
  %258 = vmatprep.subr.mxu0 0.0
  %259 = vmatpush1.xpose.msra.mxu0 0.0
  %260 = vmatprep.subr.mxu0 0.0
  %261 = vmatpush1.xpose.msra.mxu0 0.0
  %262 = vmatprep.subr.mxu0 0.0
  %263 = vmatpush1.xpose.msra.mxu0 0.0
  %264 = vmatprep.subr.mxu0 0.0
  %265 = vmatpush1.xpose.msra.mxu0 0.0
  %266 = vmatprep.subr.mxu0 0.0
  %267 = vmatpush1.xpose.msra.mxu0 0.0
  %268 = vmatprep.subr.mxu0 0.0
  %269 = vmatpush1.xpose.msra.mxu0 0.0
  %270 = vmatprep.subr.mxu0 0.0
  %271 = vmatpush1.xpose.msra.mxu0 0.0
  %272 = vmatprep.subr.mxu0 0.0
  %273 = vmatpush1.xpose.msra.mxu0 0.0
  %274 = vmatprep.subr.mxu0 0.0
  %275 = vmatpush1.xpose.msra.mxu0 0.0
  %276 = vmatprep.mubr.f32.mxu0 0.0
  %277 = vmatmul.mubr.f32.gmra.mrb[0].mxu0 %v134
  %v278 = vpop.f32.mrb[0].mxu0
  %v279 = vadd.f32 0.0, %v278
  %v280 = vpop.f32.mrb[0].mxu0
  %281 = vmatprep.mubr.f32.mxu0 0.0
  %282 = vmatmul.mubr.f32.gmra.mrb[0].mxu0 %v139
  %v283 = vpop.f32.mrb[0].mxu0
  %v284 = vadd.f32 0.0, %v283
  %v285 = vpop.f32.mrb[0].mxu0
  %286 = vmatprep.mubr.f32.mxu0 0.0
  %287 = vmatmul.mubr.f32.gmra.mrb[0].mxu0 %v144
  %v288 = vpop.f32.mrb[0].mxu0
  %v289 = vadd.f32 0.0, %v288
  %v290 = vpop.f32.mrb[0].mxu0
  %291 = vmatprep.mubr.f32.mxu0 0.0
  %292 = vmatmul.mubr.f32.gmra.mrb[0].mxu0 %v149
  %v293 = vpop.f32.mrb[0].mxu0
  %v294 = vadd.f32 0.0, %v293
  %v295 = vpop.f32.mrb[0].mxu0
  %296 = vmatprep.mubr.f32.mxu0 0.0
  %297 = vmatmul.mubr.f32.gmra.mrb[0].mxu0 %v154
  %v298 = vpop.f32.mrb[0].mxu0
  %v299 = vadd.f32 0.0, %v298
  %v300 = vpop.f32.mrb[0].mxu0
  %301 = vmatprep.mubr.f32.mxu0 0.0
  %302 = vmatmul.mubr.f32.gmra.mrb[0].mxu0 %v159
  %v303 = vpop.f32.mrb[0].mxu0
  %v304 = vadd.f32 0.0, %v303
  %v305 = vpop.f32.mrb[0].mxu0
  %306 = vmatprep.mubr.f32.mxu0 0.0
  %307 = vmatmul.mubr.f32.gmra.mrb[0].mxu0 %v164
  %v308 = vpop.f32.mrb[0].mxu0
  %v309 = vadd.f32 0.0, %v308
  %v310 = vpop.f32.mrb[0].mxu0
  %311 = vmatprep.mubr.f32.mxu0 0.0
  %312 = vmatmul.mubr.f32.gmra.mrb[0].mxu0 %v169
  %v313 = vpop.f32.mrb[0].mxu0
  %v314 = vadd.f32 0.0, %v313
  %v315 = vpop.f32.mrb[0].mxu0
  %316 = vmatprep.mubr.f32.mxu0 0.0
  %317 = vmatmul.mubr.f32.gmra.mrb[0].mxu0 %v174
  %v318 = vpop.f32.mrb[0].mxu0
  %v319 = vadd.f32 0.0, %v318
  %v320 = vpop.f32.mrb[0].mxu0
  %321 = vmatprep.mubr.f32.mxu0 0.0
  %322 = vmatmul.mubr.f32.gmra.mrb[0].mxu0 %v179
  %v323 = vpop.f32.mrb[0].mxu0
  %v324 = vadd.f32 0.0, %v323
  %v325 = vpop.f32.mrb[0].mxu0
  %326 = vmatprep.mubr.f32.mxu0 0.0
  %327 = vmatmul.mubr.f32.gmra.mrb[0].mxu0 %v184
  %v328 = vpop.f32.mrb[0].mxu0
  %v329 = vadd.f32 0.0, %v328
  %v330 = vpop.f32.mrb[0].mxu0
  %331 = vmatprep.mubr.f32.mxu0 0.0
  %332 = vmatmul.mubr.f32.gmra.mrb[0].mxu0 %v189
  %v333 = vpop.f32.mrb[0].mxu0
  %v334 = vadd.f32 0.0, %v333
  %v335 = vpop.f32.mrb[0].mxu0
  %336 = vmatprep.mubr.f32.mxu0 0.0
  %337 = vmatmul.mubr.f32.gmra.mrb[0].mxu0 %v194
  %v338 = vpop.f32.mrb[0].mxu0
  %v339 = vadd.f32 0.0, %v338
  %v340 = vpop.f32.mrb[0].mxu0
  %341 = vmatprep.mubr.f32.mxu0 0.0
  %342 = vmatmul.mubr.f32.gmra.mrb[0].mxu0 %v199
  %v343 = vpop.f32.mrb[0].mxu0
  %v344 = vadd.f32 0.0, %v343
  %v345 = vpop.f32.mrb[0].mxu0
  %346 = vmatprep.mubr.f32.mxu0 0.0
  %347 = vmatmul.mubr.f32.gmra.mrb[0].mxu0 %v204
  %v348 = vpop.f32.mrb[0].mxu0
  %v349 = vadd.f32 0.0, %v348
  %v350 = vpop.f32.mrb[0].mxu0
  %351 = vmatprep.mubr.f32.mxu0 0.0
  %352 = vmatmul.mubr.f32.gmra.mrb[0].mxu0 %v209
  %v353 = vpop.f32.mrb[0].mxu0
  %v354 = vadd.f32 0.0, %v353
  %v355 = vpop.f32.mrb[0].mxu0
  %356 = vdwg.mxu0
  %v357 = vld [vmem:[%s3] sm:$0xff]
  %v358 = vld [vmem:[%s3 + $0x8] sm:$0xff]
  %v359 = vld [vmem:[%s3 + $0x10] sm:$0xff]
  %v360 = vld [vmem:[%s3 + $0x18] sm:$0xff]
  %v361 = vld [vmem:[%s3 + $0x20] sm:$0xff]
  %v362 = vld [vmem:[%s3 + $0x28] sm:$0xff]
  %v363 = vld [vmem:[%s3 + $0x30] sm:$0xff]
  %v364 = vld [vmem:[%s3 + $0x38] sm:$0xff]
  %v365 = vld [vmem:[%s3 + $0x40] sm:$0xff]
  %v366 = vld [vmem:[%s3 + $0x48] sm:$0xff]
  %v367 = vld [vmem:[%s3 + $0x50] sm:$0xff]
  %v368 = vld [vmem:[%s3 + $0x58] sm:$0xff]
  %v369 = vld [vmem:[%s3 + $0x60] sm:$0xff]
  %v370 = vld [vmem:[%s3 + $0x68] sm:$0xff]
  %v371 = vld [vmem:[%s3 + $0x70] sm:$0xff]
  %v372 = vld [vmem:[%s3 + $0x78] sm:$0xff]
  %373 = vmatprep.subr.mxu0 0.0
  %374 = vmatpush1.msra.mxu0 %v357
  %375 = vmatprep.subr.mxu0 0.0
  %376 = vmatpush1.msra.mxu0 %v358
  %377 = vmatprep.subr.mxu0 0.0
  %378 = vmatpush1.msra.mxu0 %v359
  %379 = vmatprep.subr.mxu0 0.0
  %380 = vmatpush1.msra.mxu0 %v360
  %381 = vmatprep.subr.mxu0 0.0
  %382 = vmatpush1.msra.mxu0 %v361
  %383 = vmatprep.subr.mxu0 0.0
  %384 = vmatpush1.msra.mxu0 %v362
  %385 = vmatprep.subr.mxu0 0.0
  %386 = vmatpush1.msra.mxu0 %v363
  %387 = vmatprep.subr.mxu0 0.0
  %388 = vmatpush1.msra.mxu0 %v364
  %389 = vmatprep.subr.mxu0 0.0
  %390 = vmatpush1.msra.mxu0 %v365
  %391 = vmatprep.subr.mxu0 0.0
  %392 = vmatpush1.msra.mxu0 %v366
  %393 = vmatprep.subr.mxu0 0.0
  %394 = vmatpush1.msra.mxu0 %v367
  %395 = vmatprep.subr.mxu0 0.0
  %396 = vmatpush1.msra.mxu0 %v368
  %397 = vmatprep.subr.mxu0 0.0
  %398 = vmatpush1.msra.mxu0 %v369
  %399 = vmatprep.subr.mxu0 0.0
  %400 = vmatpush1.msra.mxu0 %v370
  %401 = vmatprep.subr.mxu0 0.0
  %402 = vmatpush1.msra.mxu0 %v371
  %403 = vmatprep.subr.mxu0 0.0
  %404 = vmatpush1.msra.mxu0 %v372
  %405 = vmatprep.subr.mxu0 0.0
  %406 = vmatpush1.msra.mxu0 0.0
  %407 = vmatprep.subr.mxu0 0.0
  %408 = vmatpush1.msra.mxu0 0.0
  %409 = vmatprep.subr.mxu0 0.0
  %410 = vmatpush1.msra.mxu0 0.0
  %411 = vmatprep.subr.mxu0 0.0
  %412 = vmatpush1.msra.mxu0 0.0
  %413 = vmatprep.subr.mxu0 0.0
  %414 = vmatpush1.msra.mxu0 0.0
  %415 = vmatprep.subr.mxu0 0.0
  %416 = vmatpush1.msra.mxu0 0.0
  %417 = vmatprep.subr.mxu0 0.0
  %418 = vmatpush1.msra.mxu0 0.0
  %419 = vmatprep.subr.mxu0 0.0
  %420 = vmatpush1.msra.mxu0 0.0
  %421 = vmatprep.subr.mxu0 0.0
  %422 = vmatpush1.msra.mxu0 0.0
  %423 = vmatprep.subr.mxu0 0.0
  %424 = vmatpush1.msra.mxu0 0.0
  %425 = vmatprep.subr.mxu0 0.0
  %426 = vmatpush1.msra.mxu0 0.0
  %427 = vmatprep.subr.mxu0 0.0
  %428 = vmatpush1.msra.mxu0 0.0
  %429 = vmatprep.subr.mxu0 0.0
  %430 = vmatpush1.msra.mxu0 0.0
  %431 = vmatprep.subr.mxu0 0.0
  %432 = vmatpush1.msra.mxu0 0.0
  %433 = vmatprep.subr.mxu0 0.0
  %434 = vmatpush1.msra.mxu0 0.0
  %435 = vmatprep.subr.mxu0 0.0
  %436 = vmatpush1.msra.mxu0 0.0
  %437 = vmatprep.mubr.f32.mxu0 0.0
  %438 = vmatmul.mubr.f32.gmra.mrb[0].mxu0 %v279
  %v439 = vpop.f32.mrb[0].mxu0
  %v440 = vadd.f32 0.0, %v439
  %v441 = vpop.f32.mrb[0].mxu0
  %442 = vmatprep.mubr.f32.mxu0 0.0
  %443 = vmatmul.mubr.f32.gmra.mrb[0].mxu0 %v284
  %v444 = vpop.f32.mrb[0].mxu0
  %v445 = vadd.f32 0.0, %v444
  %v446 = vpop.f32.mrb[0].mxu0
  %447 = vmatprep.mubr.f32.mxu0 0.0
  %448 = vmatmul.mubr.f32.gmra.mrb[0].mxu0 %v289
  %v449 = vpop.f32.mrb[0].mxu0
  %v450 = vadd.f32 0.0, %v449
  %v451 = vpop.f32.mrb[0].mxu0
  %452 = vmatprep.mubr.f32.mxu0 0.0
  %453 = vmatmul.mubr.f32.gmra.mrb[0].mxu0 %v294
  %v454 = vpop.f32.mrb[0].mxu0
  %v455 = vadd.f32 0.0, %v454
  %v456 = vpop.f32.mrb[0].mxu0
  %457 = vmatprep.mubr.f32.mxu0 0.0
  %458 = vmatmul.mubr.f32.gmra.mrb[0].mxu0 %v299
  %v459 = vpop.f32.mrb[0].mxu0
  %v460 = vadd.f32 0.0, %v459
  %v461 = vpop.f32.mrb[0].mxu0
  %462 = vmatprep.mubr.f32.mxu0 0.0
  %463 = vmatmul.mubr.f32.gmra.mrb[0].mxu0 %v304
  %v464 = vpop.f32.mrb[0].mxu0
  %v465 = vadd.f32 0.0, %v464
  %v466 = vpop.f32.mrb[0].mxu0
  %467 = vmatprep.mubr.f32.mxu0 0.0
  %468 = vmatmul.mubr.f32.gmra.mrb[0].mxu0 %v309
  %v469 = vpop.f32.mrb[0].mxu0
  %v470 = vadd.f32 0.0, %v469
  %v471 = vpop.f32.mrb[0].mxu0
  %472 = vmatprep.mubr.f32.mxu0 0.0
  %473 = vmatmul.mubr.f32.gmra.mrb[0].mxu0 %v314
  %v474 = vpop.f32.mrb[0].mxu0
  %v475 = vadd.f32 0.0, %v474
  %v476 = vpop.f32.mrb[0].mxu0
  %477 = vmatprep.mubr.f32.mxu0 0.0
  %478 = vmatmul.mubr.f32.gmra.mrb[0].mxu0 %v319
  %v479 = vpop.f32.mrb[0].mxu0
  %v480 = vadd.f32 0.0, %v479
  %v481 = vpop.f32.mrb[0].mxu0
  %482 = vmatprep.mubr.f32.mxu0 0.0
  %483 = vmatmul.mubr.f32.gmra.mrb[0].mxu0 %v324
  %v484 = vpop.f32.mrb[0].mxu0
  %v485 = vadd.f32 0.0, %v484
  %v486 = vpop.f32.mrb[0].mxu0
  %487 = vmatprep.mubr.f32.mxu0 0.0
  %488 = vmatmul.mubr.f32.gmra.mrb[0].mxu0 %v329
  %v489 = vpop.f32.mrb[0].mxu0
  %v490 = vadd.f32 0.0, %v489
  %v491 = vpop.f32.mrb[0].mxu0
  %492 = vmatprep.mubr.f32.mxu0 0.0
  %493 = vmatmul.mubr.f32.gmra.mrb[0].mxu0 %v334
  %v494 = vpop.f32.mrb[0].mxu0
  %v495 = vadd.f32 0.0, %v494
  %v496 = vpop.f32.mrb[0].mxu0
  %497 = vmatprep.mubr.f32.mxu0 0.0
  %498 = vmatmul.mubr.f32.gmra.mrb[0].mxu0 %v339
  %v499 = vpop.f32.mrb[0].mxu0
  %v500 = vadd.f32 0.0, %v499
  %v501 = vpop.f32.mrb[0].mxu0
  %502 = vmatprep.mubr.f32.mxu0 0.0
  %503 = vmatmul.mubr.f32.gmra.mrb[0].mxu0 %v344
  %v504 = vpop.f32.mrb[0].mxu0
  %v505 = vadd.f32 0.0, %v504
  %v506 = vpop.f32.mrb[0].mxu0
  %507 = vmatprep.mubr.f32.mxu0 0.0
  %508 = vmatmul.mubr.f32.gmra.mrb[0].mxu0 %v349
  %v509 = vpop.f32.mrb[0].mxu0
  %v510 = vadd.f32 0.0, %v509
  %v511 = vpop.f32.mrb[0].mxu0
  %512 = vmatprep.mubr.f32.mxu0 0.0
  %513 = vmatmul.mubr.f32.gmra.mrb[0].mxu0 %v354
  %v514 = vpop.f32.mrb[0].mxu0
  %v515 = vadd.f32 0.0, %v514
  %v516 = vpop.f32.mrb[0].mxu0
  %517 = vdwg.mxu0
  %v518 = vld [vmem:[%s1] sm:$0xff]
  %v519 = vld [vmem:[%s1 + $0x8] sm:$0xff]
  %v520 = vld [vmem:[%s1 + $0x10] sm:$0xff]
  %v521 = vld [vmem:[%s1 + $0x18] sm:$0xff]
  %v522 = vld [vmem:[%s1 + $0x20] sm:$0xff]
  %v523 = vld [vmem:[%s1 + $0x28] sm:$0xff]
  %v524 = vld [vmem:[%s1 + $0x30] sm:$0xff]
  %v525 = vld [vmem:[%s1 + $0x38] sm:$0xff]
  %v526 = vld [vmem:[%s1 + $0x40] sm:$0xff]
  %v527 = vld [vmem:[%s1 + $0x48] sm:$0xff]
  %v528 = vld [vmem:[%s1 + $0x50] sm:$0xff]
  %v529 = vld [vmem:[%s1 + $0x58] sm:$0xff]
  %v530 = vld [vmem:[%s1 + $0x60] sm:$0xff]
  %v531 = vld [vmem:[%s1 + $0x68] sm:$0xff]
  %v532 = vld [vmem:[%s1 + $0x70] sm:$0xff]
  %v533 = vld [vmem:[%s1 + $0x78] sm:$0xff]
  %534 = vmatprep.subr.mxu0 0.0
  %535 = vmatpush1.msra.mxu0 %v518
  %536 = vmatprep.subr.mxu0 0.0
  %537 = vmatpush1.msra.mxu0 %v519
  %538 = vmatprep.subr.mxu0 0.0
  %539 = vmatpush1.msra.mxu0 %v520
  %540 = vmatprep.subr.mxu0 0.0
  %541 = vmatpush1.msra.mxu0 %v521
  %542 = vmatprep.subr.mxu0 0.0
  %543 = vmatpush1.msra.mxu0 %v522
  %544 = vmatprep.subr.mxu0 0.0
  %545 = vmatpush1.msra.mxu0 %v523
  %546 = vmatprep.subr.mxu0 0.0
  %547 = vmatpush1.msra.mxu0 %v524
  %548 = vmatprep.subr.mxu0 0.0
  %549 = vmatpush1.msra.mxu0 %v525
  %550 = vmatprep.subr.mxu0 0.0
  %551 = vmatpush1.msra.mxu0 %v526
  %552 = vmatprep.subr.mxu0 0.0
  %553 = vmatpush1.msra.mxu0 %v527
  %554 = vmatprep.subr.mxu0 0.0
  %555 = vmatpush1.msra.mxu0 %v528
  %556 = vmatprep.subr.mxu0 0.0
  %557 = vmatpush1.msra.mxu0 %v529
  %558 = vmatprep.subr.mxu0 0.0
  %559 = vmatpush1.msra.mxu0 %v530
  %560 = vmatprep.subr.mxu0 0.0
  %561 = vmatpush1.msra.mxu0 %v531
  %562 = vmatprep.subr.mxu0 0.0
  %563 = vmatpush1.msra.mxu0 %v532
  %564 = vmatprep.subr.mxu0 0.0
  %565 = vmatpush1.msra.mxu0 %v533
  %566 = vmatprep.subr.mxu0 0.0
  %567 = vmatpush1.msra.mxu0 0.0
  %568 = vmatprep.subr.mxu0 0.0
  %569 = vmatpush1.msra.mxu0 0.0
  %570 = vmatprep.subr.mxu0 0.0
  %571 = vmatpush1.msra.mxu0 0.0
  %572 = vmatprep.subr.mxu0 0.0
  %573 = vmatpush1.msra.mxu0 0.0
  %574 = vmatprep.subr.mxu0 0.0
  %575 = vmatpush1.msra.mxu0 0.0
  %576 = vmatprep.subr.mxu0 0.0
  %577 = vmatpush1.msra.mxu0 0.0
  %578 = vmatprep.subr.mxu0 0.0
  %579 = vmatpush1.msra.mxu0 0.0
  %580 = vmatprep.subr.mxu0 0.0
  %581 = vmatpush1.msra.mxu0 0.0
  %582 = vmatprep.subr.mxu0 0.0
  %583 = vmatpush1.msra.mxu0 0.0
  %584 = vmatprep.subr.mxu0 0.0
  %585 = vmatpush1.msra.mxu0 0.0
  %586 = vmatprep.subr.mxu0 0.0
  %587 = vmatpush1.msra.mxu0 0.0
  %588 = vmatprep.subr.mxu0 0.0
  %589 = vmatpush1.msra.mxu0 0.0
  %590 = vmatprep.subr.mxu0 0.0
  %591 = vmatpush1.msra.mxu0 0.0
  %592 = vmatprep.subr.mxu0 0.0
  %593 = vmatpush1.msra.mxu0 0.0
  %594 = vmatprep.subr.mxu0 0.0
  %595 = vmatpush1.msra.mxu0 0.0
  %596 = vmatprep.subr.mxu0 0.0
  %597 = vmatpush1.msra.mxu0 0.0
  %598 = vmatprep.mubr.f32.mxu0 0.0
  %599 = vmatmul.mubr.f32.gmra.mrb[0].mxu0 %v440
  %v600 = vpop.f32.mrb[0].mxu0
  %v601 = vadd.f32 0.0, %v600
  %v602 = vpop.f32.mrb[0].mxu0
  %603 = vmatprep.mubr.f32.mxu0 0.0
  %604 = vmatmul.mubr.f32.gmra.mrb[0].mxu0 %v445
  %v605 = vpop.f32.mrb[0].mxu0
  %v606 = vadd.f32 0.0, %v605
  %v607 = vpop.f32.mrb[0].mxu0
  %608 = vmatprep.mubr.f32.mxu0 0.0
  %609 = vmatmul.mubr.f32.gmra.mrb[0].mxu0 %v450
  %v610 = vpop.f32.mrb[0].mxu0
  %v611 = vadd.f32 0.0, %v610
  %v612 = vpop.f32.mrb[0].mxu0
  %613 = vmatprep.mubr.f32.mxu0 0.0
  %614 = vmatmul.mubr.f32.gmra.mrb[0].mxu0 %v455
  %v615 = vpop.f32.mrb[0].mxu0
  %v616 = vadd.f32 0.0, %v615
  %v617 = vpop.f32.mrb[0].mxu0
  %618 = vmatprep.mubr.f32.mxu0 0.0
  %619 = vmatmul.mubr.f32.gmra.mrb[0].mxu0 %v460
  %v620 = vpop.f32.mrb[0].mxu0
  %v621 = vadd.f32 0.0, %v620
  %v622 = vpop.f32.mrb[0].mxu0
  %623 = vmatprep.mubr.f32.mxu0 0.0
  %624 = vmatmul.mubr.f32.gmra.mrb[0].mxu0 %v465
  %v625 = vpop.f32.mrb[0].mxu0
  %v626 = vadd.f32 0.0, %v625
  %v627 = vpop.f32.mrb[0].mxu0
  %628 = vmatprep.mubr.f32.mxu0 0.0
  %629 = vmatmul.mubr.f32.gmra.mrb[0].mxu0 %v470
  %v630 = vpop.f32.mrb[0].mxu0
  %v631 = vadd.f32 0.0, %v630
  %v632 = vpop.f32.mrb[0].mxu0
  %633 = vmatprep.mubr.f32.mxu0 0.0
  %634 = vmatmul.mubr.f32.gmra.mrb[0].mxu0 %v475
  %v635 = vpop.f32.mrb[0].mxu0
  %v636 = vadd.f32 0.0, %v635
  %v637 = vpop.f32.mrb[0].mxu0
  %638 = vmatprep.mubr.f32.mxu0 0.0
  %639 = vmatmul.mubr.f32.gmra.mrb[0].mxu0 %v480
  %v640 = vpop.f32.mrb[0].mxu0
  %v641 = vadd.f32 0.0, %v640
  %v642 = vpop.f32.mrb[0].mxu0
  %643 = vmatprep.mubr.f32.mxu0 0.0
  %644 = vmatmul.mubr.f32.gmra.mrb[0].mxu0 %v485
  %v645 = vpop.f32.mrb[0].mxu0
  %v646 = vadd.f32 0.0, %v645
  %v647 = vpop.f32.mrb[0].mxu0
  %648 = vmatprep.mubr.f32.mxu0 0.0
  %649 = vmatmul.mubr.f32.gmra.mrb[0].mxu0 %v490
  %v650 = vpop.f32.mrb[0].mxu0
  %v651 = vadd.f32 0.0, %v650
  %v652 = vpop.f32.mrb[0].mxu0
  %653 = vmatprep.mubr.f32.mxu0 0.0
  %654 = vmatmul.mubr.f32.gmra.mrb[0].mxu0 %v495
  %v655 = vpop.f32.mrb[0].mxu0
  %v656 = vadd.f32 0.0, %v655
  %v657 = vpop.f32.mrb[0].mxu0
  %658 = vmatprep.mubr.f32.mxu0 0.0
  %659 = vmatmul.mubr.f32.gmra.mrb[0].mxu0 %v500
  %v660 = vpop.f32.mrb[0].mxu0
  %v661 = vadd.f32 0.0, %v660
  %v662 = vpop.f32.mrb[0].mxu0
  %663 = vmatprep.mubr.f32.mxu0 0.0
  %664 = vmatmul.mubr.f32.gmra.mrb[0].mxu0 %v505
  %v665 = vpop.f32.mrb[0].mxu0
  %v666 = vadd.f32 0.0, %v665
  %v667 = vpop.f32.mrb[0].mxu0
  %668 = vmatprep.mubr.f32.mxu0 0.0
  %669 = vmatmul.mubr.f32.gmra.mrb[0].mxu0 %v510
  %v670 = vpop.f32.mrb[0].mxu0
  %v671 = vadd.f32 0.0, %v670
  %v672 = vpop.f32.mrb[0].mxu0
  %673 = vmatprep.mubr.f32.mxu0 0.0
  %674 = vmatmul.mubr.f32.gmra.mrb[0].mxu0 %v515
  %v675 = vpop.f32.mrb[0].mxu0
  %v676 = vadd.f32 0.0, %v675
  %v677 = vpop.f32.mrb[0].mxu0
  %678 = vdwg.mxu0
  %679 = vmatprep.subr.mxu0 0.0
  %680 = vmatpush1.xpose.msra.mxu0 %v601
  %681 = vmatprep.subr.mxu0 0.0
  %682 = vmatpush1.xpose.msra.mxu0 %v606
  %683 = vmatprep.subr.mxu0 0.0
  %684 = vmatpush1.xpose.msra.mxu0 %v611
  %685 = vmatprep.subr.mxu0 0.0
  %686 = vmatpush1.xpose.msra.mxu0 %v616
  %687 = vmatprep.subr.mxu0 0.0
  %688 = vmatpush1.xpose.msra.mxu0 %v621
  %689 = vmatprep.subr.mxu0 0.0
  %690 = vmatpush1.xpose.msra.mxu0 %v626
  %691 = vmatprep.subr.mxu0 0.0
  %692 = vmatpush1.xpose.msra.mxu0 %v631
  %693 = vmatprep.subr.mxu0 0.0
  %694 = vmatpush1.xpose.msra.mxu0 %v636
  %695 = vmatprep.subr.mxu0 0.0
  %696 = vmatpush1.xpose.msra.mxu0 %v641
  %697 = vmatprep.subr.mxu0 0.0
  %698 = vmatpush1.xpose.msra.mxu0 %v646
  %699 = vmatprep.subr.mxu0 0.0
  %700 = vmatpush1.xpose.msra.mxu0 %v651
  %701 = vmatprep.subr.mxu0 0.0
  %702 = vmatpush1.xpose.msra.mxu0 %v656
  %703 = vmatprep.subr.mxu0 0.0
  %704 = vmatpush1.xpose.msra.mxu0 %v661
  %705 = vmatprep.subr.mxu0 0.0
  %706 = vmatpush1.xpose.msra.mxu0 %v666
  %707 = vmatprep.subr.mxu0 0.0
  %708 = vmatpush1.xpose.msra.mxu0 %v671
  %709 = vmatprep.subr.mxu0 0.0
  %710 = vmatpush1.xpose.msra.mxu0 %v676
  %711 = vmatprep.subr.mxu0 0.0
  %712 = vmatpush1.xpose.msra.mxu0 0.0
  %713 = vmatprep.subr.mxu0 0.0
  %714 = vmatpush1.xpose.msra.mxu0 0.0
  %715 = vmatprep.subr.mxu0 0.0
  %716 = vmatpush1.xpose.msra.mxu0 0.0
  %717 = vmatprep.subr.mxu0 0.0
  %718 = vmatpush1.xpose.msra.mxu0 0.0
  %719 = vmatprep.subr.mxu0 0.0
  %720 = vmatpush1.xpose.msra.mxu0 0.0
  %721 = vmatprep.subr.mxu0 0.0
  %722 = vmatpush1.xpose.msra.mxu0 0.0
  %723 = vmatprep.subr.mxu0 0.0
  %724 = vmatpush1.xpose.msra.mxu0 0.0
  %725 = vmatprep.subr.mxu0 0.0
  %726 = vmatpush1.xpose.msra.mxu0 0.0
  %727 = vmatprep.subr.mxu0 0.0
  %728 = vmatpush1.xpose.msra.mxu0 0.0
  %729 = vmatprep.subr.mxu0 0.0
  %730 = vmatpush1.xpose.msra.mxu0 0.0
  %731 = vmatprep.subr.mxu0 0.0
  %732 = vmatpush1.xpose.msra.mxu0 0.0
  %733 = vmatprep.subr.mxu0 0.0
  %734 = vmatpush1.xpose.msra.mxu0 0.0
  %735 = vmatprep.subr.mxu0 0.0
  %736 = vmatpush1.xpose.msra.mxu0 0.0
  %737 = vmatprep.subr.mxu0 0.0
  %738 = vmatpush1.xpose.msra.mxu0 0.0
  %739 = vmatprep.subr.mxu0 0.0
  %740 = vmatpush1.xpose.msra.mxu0 0.0
  %741 = vmatprep.subr.mxu0 0.0
  %742 = vmatpush1.xpose.msra.mxu0 0.0
  %743 = vmatprep.mubr.f32.mxu0 0.0
  %744 = vmatmul.mubr.f32.gmra.mrb[0].mxu0 %v601
  %v745 = vpop.f32.mrb[0].mxu0
  %v746 = vadd.f32 0.0, %v745
  %v747 = vpop.f32.mrb[0].mxu0
  %748 = vmatprep.mubr.f32.mxu0 0.0
  %749 = vmatmul.mubr.f32.gmra.mrb[0].mxu0 %v606
  %v750 = vpop.f32.mrb[0].mxu0
  %v751 = vadd.f32 0.0, %v750
  %v752 = vpop.f32.mrb[0].mxu0
  %753 = vmatprep.mubr.f32.mxu0 0.0
  %754 = vmatmul.mubr.f32.gmra.mrb[0].mxu0 %v611
  %v755 = vpop.f32.mrb[0].mxu0
  %v756 = vadd.f32 0.0, %v755
  %v757 = vpop.f32.mrb[0].mxu0
  %758 = vmatprep.mubr.f32.mxu0 0.0
  %759 = vmatmul.mubr.f32.gmra.mrb[0].mxu0 %v616
  %v760 = vpop.f32.mrb[0].mxu0
  %v761 = vadd.f32 0.0, %v760
  %v762 = vpop.f32.mrb[0].mxu0
  %763 = vmatprep.mubr.f32.mxu0 0.0
  %764 = vmatmul.mubr.f32.gmra.mrb[0].mxu0 %v621
  %v765 = vpop.f32.mrb[0].mxu0
  %v766 = vadd.f32 0.0, %v765
  %v767 = vpop.f32.mrb[0].mxu0
  %768 = vmatprep.mubr.f32.mxu0 0.0
  %769 = vmatmul.mubr.f32.gmra.mrb[0].mxu0 %v626
  %v770 = vpop.f32.mrb[0].mxu0
  %v771 = vadd.f32 0.0, %v770
  %v772 = vpop.f32.mrb[0].mxu0
  %773 = vmatprep.mubr.f32.mxu0 0.0
  %774 = vmatmul.mubr.f32.gmra.mrb[0].mxu0 %v631
  %v775 = vpop.f32.mrb[0].mxu0
  %v776 = vadd.f32 0.0, %v775
  %v777 = vpop.f32.mrb[0].mxu0
  %778 = vmatprep.mubr.f32.mxu0 0.0
  %779 = vmatmul.mubr.f32.gmra.mrb[0].mxu0 %v636
  %v780 = vpop.f32.mrb[0].mxu0
  %v781 = vadd.f32 0.0, %v780
  %v782 = vpop.f32.mrb[0].mxu0
  %783 = vmatprep.mubr.f32.mxu0 0.0
  %784 = vmatmul.mubr.f32.gmra.mrb[0].mxu0 %v641
  %v785 = vpop.f32.mrb[0].mxu0
  %v786 = vadd.f32 0.0, %v785
  %v787 = vpop.f32.mrb[0].mxu0
  %788 = vmatprep.mubr.f32.mxu0 0.0
  %789 = vmatmul.mubr.f32.gmra.mrb[0].mxu0 %v646
  %v790 = vpop.f32.mrb[0].mxu0
  %v791 = vadd.f32 0.0, %v790
  %v792 = vpop.f32.mrb[0].mxu0
  %793 = vmatprep.mubr.f32.mxu0 0.0
  %794 = vmatmul.mubr.f32.gmra.mrb[0].mxu0 %v651
  %v795 = vpop.f32.mrb[0].mxu0
  %v796 = vadd.f32 0.0, %v795
  %v797 = vpop.f32.mrb[0].mxu0
  %798 = vmatprep.mubr.f32.mxu0 0.0
  %799 = vmatmul.mubr.f32.gmra.mrb[0].mxu0 %v656
  %v800 = vpop.f32.mrb[0].mxu0
  %v801 = vadd.f32 0.0, %v800
  %v802 = vpop.f32.mrb[0].mxu0
  %803 = vmatprep.mubr.f32.mxu0 0.0
  %804 = vmatmul.mubr.f32.gmra.mrb[0].mxu0 %v661
  %v805 = vpop.f32.mrb[0].mxu0
  %v806 = vadd.f32 0.0, %v805
  %v807 = vpop.f32.mrb[0].mxu0
  %808 = vmatprep.mubr.f32.mxu0 0.0
  %809 = vmatmul.mubr.f32.gmra.mrb[0].mxu0 %v666
  %v810 = vpop.f32.mrb[0].mxu0
  %v811 = vadd.f32 0.0, %v810
  %v812 = vpop.f32.mrb[0].mxu0
  %813 = vmatprep.mubr.f32.mxu0 0.0
  %814 = vmatmul.mubr.f32.gmra.mrb[0].mxu0 %v671
  %v815 = vpop.f32.mrb[0].mxu0
  %v816 = vadd.f32 0.0, %v815
  %v817 = vpop.f32.mrb[0].mxu0
  %818 = vmatprep.mubr.f32.mxu0 0.0
  %819 = vmatmul.mubr.f32.gmra.mrb[0].mxu0 %v676
  %v820 = vpop.f32.mrb[0].mxu0
  %v821 = vadd.f32 0.0, %v820
  %v822 = vpop.f32.mrb[0].mxu0
  %823 = vdwg.mxu0
  %v824 = vmul.f32 %v746, %v746
  %v825 = vmul.f32 %v751, %v751
  %v826 = vmul.f32 %v756, %v756
  %v827 = vmul.f32 %v761, %v761
  %v828 = vmul.f32 %v766, %v766
  %v829 = vmul.f32 %v771, %v771
  %v830 = vmul.f32 %v776, %v776
  %v831 = vmul.f32 %v781, %v781
  %v832 = vmul.f32 %v786, %v786
  %v833 = vmul.f32 %v791, %v791
  %v834 = vmul.f32 %v796, %v796
  %v835 = vmul.f32 %v801, %v801
  %v836 = vmul.f32 %v806, %v806
  %v837 = vmul.f32 %v811, %v811
  %v838 = vmul.f32 %v816, %v816
  %v839 = vmul.f32 %v821, %v821
  %840 = vadd.xlane.f32.xlu0 %v824
  %v841 = vpop.xlane.xlu0 %840
  %842 = vadd.xlane.f32.xlu0 %v825
  %v843 = vpop.xlane.xlu0 %842
  %844 = vadd.xlane.f32.xlu0 %v826
  %v845 = vpop.xlane.xlu0 %844
  %846 = vadd.xlane.f32.xlu0 %v827
  %v847 = vpop.xlane.xlu0 %846
  %848 = vadd.xlane.f32.xlu0 %v828
  %v849 = vpop.xlane.xlu0 %848
  %850 = vadd.xlane.f32.xlu0 %v829
  %v851 = vpop.xlane.xlu0 %850
  %852 = vadd.xlane.f32.xlu0 %v830
  %v853 = vpop.xlane.xlu0 %852
  %854 = vadd.xlane.f32.xlu0 %v831
  %v855 = vpop.xlane.xlu0 %854
  %856 = vadd.xlane.f32.xlu0 %v832
  %v857 = vpop.xlane.xlu0 %856
  %858 = vadd.xlane.f32.xlu0 %v833
  %v859 = vpop.xlane.xlu0 %858
  %860 = vadd.xlane.f32.xlu0 %v834
  %v861 = vpop.xlane.xlu0 %860
  %862 = vadd.xlane.f32.xlu0 %v835
  %v863 = vpop.xlane.xlu0 %862
  %864 = vadd.xlane.f32.xlu0 %v836
  %v865 = vpop.xlane.xlu0 %864
  %866 = vadd.xlane.f32.xlu0 %v837
  %v867 = vpop.xlane.xlu0 %866
  %868 = vadd.xlane.f32.xlu0 %v838
  %v869 = vpop.xlane.xlu0 %868
  %870 = vadd.xlane.f32.xlu0 %v839
  %v871 = vpop.xlane.xlu0 %870
  %v872 = vmax.f32 %v841, 1e-24
  %v873 = vmax.f32 %v843, 1e-24
  %v874 = vmax.f32 %v845, 1e-24
  %v875 = vmax.f32 %v847, 1e-24
  %v876 = vmax.f32 %v849, 1e-24
  %v877 = vmax.f32 %v851, 1e-24
  %v878 = vmax.f32 %v853, 1e-24
  %v879 = vmax.f32 %v855, 1e-24
  %v880 = vmax.f32 %v857, 1e-24
  %v881 = vmax.f32 %v859, 1e-24
  %v882 = vmax.f32 %v861, 1e-24
  %v883 = vmax.f32 %v863, 1e-24
  %v884 = vmax.f32 %v865, 1e-24
  %v885 = vmax.f32 %v867, 1e-24
  %v886 = vmax.f32 %v869, 1e-24
  %v887 = vmax.f32 %v871, 1e-24
  %v888 = vrsqrt.pop %v872
  %v889 = vrsqrt.pop %v873
  %v890 = vrsqrt.pop %v874
  %v891 = vrsqrt.pop %v875
  %v892 = vrsqrt.pop %v876
  %v893 = vrsqrt.pop %v877
  %v894 = vrsqrt.pop %v878
  %v895 = vrsqrt.pop %v879
  %v896 = vrsqrt.pop %v880
  %v897 = vrsqrt.pop %v881
  %v898 = vrsqrt.pop %v882
  %v899 = vrsqrt.pop %v883
  %v900 = vrsqrt.pop %v884
  %v901 = vrsqrt.pop %v885
  %v902 = vrsqrt.pop %v886
  %v903 = vrsqrt.pop %v887
  %v904 = vmul.f32 %v746, %v888
  %v905 = vmul.f32 %v751, %v889
  %v906 = vmul.f32 %v756, %v890
  %v907 = vmul.f32 %v761, %v891
  %v908 = vmul.f32 %v766, %v892
  %v909 = vmul.f32 %v771, %v893
  %v910 = vmul.f32 %v776, %v894
  %v911 = vmul.f32 %v781, %v895
  %v912 = vmul.f32 %v786, %v896
  %v913 = vmul.f32 %v791, %v897
  %v914 = vmul.f32 %v796, %v898
  %v915 = vmul.f32 %v801, %v899
  %v916 = vmul.f32 %v806, %v900
  %v917 = vmul.f32 %v811, %v901
  %v918 = vmul.f32 %v816, %v902
  %v919 = vmul.f32 %v821, %v903
  %v920 = vld [vmem:[%s5] sm:$0xff]
  %v921 = vld [vmem:[%s5 + $0x8] sm:$0xff]
  %v922 = vld [vmem:[%s5 + $0x10] sm:$0xff]
  %v923 = vld [vmem:[%s5 + $0x18] sm:$0xff]
  %v924 = vld [vmem:[%s5 + $0x20] sm:$0xff]
  %v925 = vld [vmem:[%s5 + $0x28] sm:$0xff]
  %v926 = vld [vmem:[%s5 + $0x30] sm:$0xff]
  %v927 = vld [vmem:[%s5 + $0x38] sm:$0xff]
  %v928 = vld [vmem:[%s5 + $0x40] sm:$0xff]
  %v929 = vld [vmem:[%s5 + $0x48] sm:$0xff]
  %v930 = vld [vmem:[%s5 + $0x50] sm:$0xff]
  %v931 = vld [vmem:[%s5 + $0x58] sm:$0xff]
  %v932 = vld [vmem:[%s5 + $0x60] sm:$0xff]
  %v933 = vld [vmem:[%s5 + $0x68] sm:$0xff]
  %v934 = vld [vmem:[%s5 + $0x70] sm:$0xff]
  %v935 = vld [vmem:[%s5 + $0x78] sm:$0xff]
  %v936 = vld [vmem:[%s6] sm:$0x1]
  %v938 = vlaneseq
  %v939 = vshrl.u32 %v938, 7
  %v940 = vsub.s32 0, %v939
  %v941 = vrot.slane %v936, %v940
  %943 = vmatprep.subr.mxu0 0.0
  %944 = vmatpush1.msra.mxu0 %v920
  %945 = vmatprep.subr.mxu0 0.0
  %946 = vmatpush1.msra.mxu0 %v921
  %947 = vmatprep.subr.mxu0 0.0
  %948 = vmatpush1.msra.mxu0 %v922
  %949 = vmatprep.subr.mxu0 0.0
  %950 = vmatpush1.msra.mxu0 %v923
  %951 = vmatprep.subr.mxu0 0.0
  %952 = vmatpush1.msra.mxu0 %v924
  %953 = vmatprep.subr.mxu0 0.0
  %954 = vmatpush1.msra.mxu0 %v925
  %955 = vmatprep.subr.mxu0 0.0
  %956 = vmatpush1.msra.mxu0 %v926
  %957 = vmatprep.subr.mxu0 0.0
  %958 = vmatpush1.msra.mxu0 %v927
  %959 = vmatprep.subr.mxu0 0.0
  %960 = vmatpush1.msra.mxu0 %v928
  %961 = vmatprep.subr.mxu0 0.0
  %962 = vmatpush1.msra.mxu0 %v929
  %963 = vmatprep.subr.mxu0 0.0
  %964 = vmatpush1.msra.mxu0 %v930
  %965 = vmatprep.subr.mxu0 0.0
  %966 = vmatpush1.msra.mxu0 %v931
  %967 = vmatprep.subr.mxu0 0.0
  %968 = vmatpush1.msra.mxu0 %v932
  %969 = vmatprep.subr.mxu0 0.0
  %970 = vmatpush1.msra.mxu0 %v933
  %971 = vmatprep.subr.mxu0 0.0
  %972 = vmatpush1.msra.mxu0 %v934
  %973 = vmatprep.subr.mxu0 0.0
  %974 = vmatpush1.msra.mxu0 %v935
  %975 = vmatprep.subr.mxu0 0.0
  %976 = vmatpush1.msra.mxu0 0.0
  %977 = vmatprep.subr.mxu0 0.0
  %978 = vmatpush1.msra.mxu0 0.0
  %979 = vmatprep.subr.mxu0 0.0
  %980 = vmatpush1.msra.mxu0 0.0
  %981 = vmatprep.subr.mxu0 0.0
  %982 = vmatpush1.msra.mxu0 0.0
  %983 = vmatprep.subr.mxu0 0.0
  %984 = vmatpush1.msra.mxu0 0.0
  %985 = vmatprep.subr.mxu0 0.0
  %986 = vmatpush1.msra.mxu0 0.0
  %987 = vmatprep.subr.mxu0 0.0
  %988 = vmatpush1.msra.mxu0 0.0
  %989 = vmatprep.subr.mxu0 0.0
  %990 = vmatpush1.msra.mxu0 0.0
  %991 = vmatprep.subr.mxu0 0.0
  %992 = vmatpush1.msra.mxu0 0.0
  %993 = vmatprep.subr.mxu0 0.0
  %994 = vmatpush1.msra.mxu0 0.0
  %995 = vmatprep.subr.mxu0 0.0
  %996 = vmatpush1.msra.mxu0 0.0
  %997 = vmatprep.subr.mxu0 0.0
  %998 = vmatpush1.msra.mxu0 0.0
  %999 = vmatprep.subr.mxu0 0.0
  %1000 = vmatpush1.msra.mxu0 0.0
  %1001 = vmatprep.subr.mxu0 0.0
  %1002 = vmatpush1.msra.mxu0 0.0
  %1003 = vmatprep.subr.mxu0 0.0
  %1004 = vmatpush1.msra.mxu0 0.0
  %1005 = vmatprep.subr.mxu0 0.0
  %1006 = vmatpush1.msra.mxu0 0.0
  %1007 = vmatprep.mubr.f32.mxu0 0.0
  %1008 = vmatmul.mubr.f32.gmra.mrb[0].mxu0 %v904
  %v1009 = vpop.f32.mrb[0].mxu0
  %v1010 = vadd.f32 %v941, %v1009
  %v1011 = vpop.f32.mrb[0].mxu0
  %1012 = vmatprep.mubr.f32.mxu0 0.0
  %1013 = vmatmul.mubr.f32.gmra.mrb[0].mxu0 %v905
  %v1014 = vpop.f32.mrb[0].mxu0
  %v1015 = vadd.f32 %v941, %v1014
  %v1016 = vpop.f32.mrb[0].mxu0
  %1017 = vmatprep.mubr.f32.mxu0 0.0
  %1018 = vmatmul.mubr.f32.gmra.mrb[0].mxu0 %v906
  %v1019 = vpop.f32.mrb[0].mxu0
  %v1020 = vadd.f32 %v941, %v1019
  %v1021 = vpop.f32.mrb[0].mxu0
  %1022 = vmatprep.mubr.f32.mxu0 0.0
  %1023 = vmatmul.mubr.f32.gmra.mrb[0].mxu0 %v907
  %v1024 = vpop.f32.mrb[0].mxu0
  %v1025 = vadd.f32 %v941, %v1024
  %v1026 = vpop.f32.mrb[0].mxu0
  %1027 = vmatprep.mubr.f32.mxu0 0.0
  %1028 = vmatmul.mubr.f32.gmra.mrb[0].mxu0 %v908
  %v1029 = vpop.f32.mrb[0].mxu0
  %v1030 = vadd.f32 %v941, %v1029
  %v1031 = vpop.f32.mrb[0].mxu0
  %1032 = vmatprep.mubr.f32.mxu0 0.0
  %1033 = vmatmul.mubr.f32.gmra.mrb[0].mxu0 %v909
  %v1034 = vpop.f32.mrb[0].mxu0
  %v1035 = vadd.f32 %v941, %v1034
  %v1036 = vpop.f32.mrb[0].mxu0
  %1037 = vmatprep.mubr.f32.mxu0 0.0
  %1038 = vmatmul.mubr.f32.gmra.mrb[0].mxu0 %v910
  %v1039 = vpop.f32.mrb[0].mxu0
  %v1040 = vadd.f32 %v941, %v1039
  %v1041 = vpop.f32.mrb[0].mxu0
  %1042 = vmatprep.mubr.f32.mxu0 0.0
  %1043 = vmatmul.mubr.f32.gmra.mrb[0].mxu0 %v911
  %v1044 = vpop.f32.mrb[0].mxu0
  %v1045 = vadd.f32 %v941, %v1044
  %v1046 = vpop.f32.mrb[0].mxu0
  %1047 = vmatprep.mubr.f32.mxu0 0.0
  %1048 = vmatmul.mubr.f32.gmra.mrb[0].mxu0 %v912
  %v1049 = vpop.f32.mrb[0].mxu0
  %v1050 = vadd.f32 %v941, %v1049
  %v1051 = vpop.f32.mrb[0].mxu0
  %1052 = vmatprep.mubr.f32.mxu0 0.0
  %1053 = vmatmul.mubr.f32.gmra.mrb[0].mxu0 %v913
  %v1054 = vpop.f32.mrb[0].mxu0
  %v1055 = vadd.f32 %v941, %v1054
  %v1056 = vpop.f32.mrb[0].mxu0
  %1057 = vmatprep.mubr.f32.mxu0 0.0
  %1058 = vmatmul.mubr.f32.gmra.mrb[0].mxu0 %v914
  %v1059 = vpop.f32.mrb[0].mxu0
  %v1060 = vadd.f32 %v941, %v1059
  %v1061 = vpop.f32.mrb[0].mxu0
  %1062 = vmatprep.mubr.f32.mxu0 0.0
  %1063 = vmatmul.mubr.f32.gmra.mrb[0].mxu0 %v915
  %v1064 = vpop.f32.mrb[0].mxu0
  %v1065 = vadd.f32 %v941, %v1064
  %v1066 = vpop.f32.mrb[0].mxu0
  %1067 = vmatprep.mubr.f32.mxu0 0.0
  %1068 = vmatmul.mubr.f32.gmra.mrb[0].mxu0 %v916
  %v1069 = vpop.f32.mrb[0].mxu0
  %v1070 = vadd.f32 %v941, %v1069
  %v1071 = vpop.f32.mrb[0].mxu0
  %1072 = vmatprep.mubr.f32.mxu0 0.0
  %1073 = vmatmul.mubr.f32.gmra.mrb[0].mxu0 %v917
  %v1074 = vpop.f32.mrb[0].mxu0
  %v1075 = vadd.f32 %v941, %v1074
  %v1076 = vpop.f32.mrb[0].mxu0
  %1077 = vmatprep.mubr.f32.mxu0 0.0
  %1078 = vmatmul.mubr.f32.gmra.mrb[0].mxu0 %v918
  %v1079 = vpop.f32.mrb[0].mxu0
  %v1080 = vadd.f32 %v941, %v1079
  %v1081 = vpop.f32.mrb[0].mxu0
  %1082 = vmatprep.mubr.f32.mxu0 0.0
  %1083 = vmatmul.mubr.f32.gmra.mrb[0].mxu0 %v919
  %v1084 = vpop.f32.mrb[0].mxu0
  %v1085 = vadd.f32 %v941, %v1084
  %v1086 = vpop.f32.mrb[0].mxu0
  %1087 = vdwg.mxu0
  %v1088 = vld [vmem:[%s7] sm:$0xff]
  %v1089 = vld [vmem:[%s7 + $0x8] sm:$0xff]
  %v1090 = vld [vmem:[%s7 + $0x10] sm:$0xff]
  %v1091 = vld [vmem:[%s7 + $0x18] sm:$0xff]
  %v1092 = vld [vmem:[%s7 + $0x20] sm:$0xff]
  %v1093 = vld [vmem:[%s7 + $0x28] sm:$0xff]
  %v1094 = vld [vmem:[%s7 + $0x30] sm:$0xff]
  %v1095 = vld [vmem:[%s7 + $0x38] sm:$0xff]
  %v1096 = vld [vmem:[%s7 + $0x40] sm:$0xff]
  %v1097 = vld [vmem:[%s7 + $0x48] sm:$0xff]
  %v1098 = vld [vmem:[%s7 + $0x50] sm:$0xff]
  %v1099 = vld [vmem:[%s7 + $0x58] sm:$0xff]
  %v1100 = vld [vmem:[%s7 + $0x60] sm:$0xff]
  %v1101 = vld [vmem:[%s7 + $0x68] sm:$0xff]
  %v1102 = vld [vmem:[%s7 + $0x70] sm:$0xff]
  %v1103 = vld [vmem:[%s7 + $0x78] sm:$0xff]
  %v1104 = vld [vmem:[%s8] sm:$0x1]
  %v1106 = vlaneseq
  %v1107 = vshrl.u32 %v1106, 7
  %v1108 = vsub.s32 0, %v1107
  %v1109 = vrot.slane %v1104, %v1108
  %1111 = vmatprep.subr.mxu0 0.0
  %1112 = vmatpush1.msra.mxu0 %v1088
  %1113 = vmatprep.subr.mxu0 0.0
  %1114 = vmatpush1.msra.mxu0 %v1089
  %1115 = vmatprep.subr.mxu0 0.0
  %1116 = vmatpush1.msra.mxu0 %v1090
  %1117 = vmatprep.subr.mxu0 0.0
  %1118 = vmatpush1.msra.mxu0 %v1091
  %1119 = vmatprep.subr.mxu0 0.0
  %1120 = vmatpush1.msra.mxu0 %v1092
  %1121 = vmatprep.subr.mxu0 0.0
  %1122 = vmatpush1.msra.mxu0 %v1093
  %1123 = vmatprep.subr.mxu0 0.0
  %1124 = vmatpush1.msra.mxu0 %v1094
  %1125 = vmatprep.subr.mxu0 0.0
  %1126 = vmatpush1.msra.mxu0 %v1095
  %1127 = vmatprep.subr.mxu0 0.0
  %1128 = vmatpush1.msra.mxu0 %v1096
  %1129 = vmatprep.subr.mxu0 0.0
  %1130 = vmatpush1.msra.mxu0 %v1097
  %1131 = vmatprep.subr.mxu0 0.0
  %1132 = vmatpush1.msra.mxu0 %v1098
  %1133 = vmatprep.subr.mxu0 0.0
  %1134 = vmatpush1.msra.mxu0 %v1099
  %1135 = vmatprep.subr.mxu0 0.0
  %1136 = vmatpush1.msra.mxu0 %v1100
  %1137 = vmatprep.subr.mxu0 0.0
  %1138 = vmatpush1.msra.mxu0 %v1101
  %1139 = vmatprep.subr.mxu0 0.0
  %1140 = vmatpush1.msra.mxu0 %v1102
  %1141 = vmatprep.subr.mxu0 0.0
  %1142 = vmatpush1.msra.mxu0 %v1103
  %1143 = vmatprep.subr.mxu0 0.0
  %1144 = vmatpush1.msra.mxu0 0.0
  %1145 = vmatprep.subr.mxu0 0.0
  %1146 = vmatpush1.msra.mxu0 0.0
  %1147 = vmatprep.subr.mxu0 0.0
  %1148 = vmatpush1.msra.mxu0 0.0
  %1149 = vmatprep.subr.mxu0 0.0
  %1150 = vmatpush1.msra.mxu0 0.0
  %1151 = vmatprep.subr.mxu0 0.0
  %1152 = vmatpush1.msra.mxu0 0.0
  %1153 = vmatprep.subr.mxu0 0.0
  %1154 = vmatpush1.msra.mxu0 0.0
  %1155 = vmatprep.subr.mxu0 0.0
  %1156 = vmatpush1.msra.mxu0 0.0
  %1157 = vmatprep.subr.mxu0 0.0
  %1158 = vmatpush1.msra.mxu0 0.0
  %1159 = vmatprep.subr.mxu0 0.0
  %1160 = vmatpush1.msra.mxu0 0.0
  %1161 = vmatprep.subr.mxu0 0.0
  %1162 = vmatpush1.msra.mxu0 0.0
  %1163 = vmatprep.subr.mxu0 0.0
  %1164 = vmatpush1.msra.mxu0 0.0
  %1165 = vmatprep.subr.mxu0 0.0
  %1166 = vmatpush1.msra.mxu0 0.0
  %1167 = vmatprep.subr.mxu0 0.0
  %1168 = vmatpush1.msra.mxu0 0.0
  %1169 = vmatprep.subr.mxu0 0.0
  %1170 = vmatpush1.msra.mxu0 0.0
  %1171 = vmatprep.subr.mxu0 0.0
  %1172 = vmatpush1.msra.mxu0 0.0
  %1173 = vmatprep.subr.mxu0 0.0
  %1174 = vmatpush1.msra.mxu0 0.0
  %1175 = vmatprep.mubr.f32.mxu0 0.0
  %1176 = vmatmul.mubr.f32.gmra.mrb[0].mxu0 %v1010
  %v1177 = vpop.f32.mrb[0].mxu0
  %v1178 = vadd.f32 %v1109, %v1177
  %v1179 = vpop.f32.mrb[0].mxu0
  %1180 = vmatprep.mubr.f32.mxu0 0.0
  %1181 = vmatmul.mubr.f32.gmra.mrb[0].mxu0 %v1015
  %v1182 = vpop.f32.mrb[0].mxu0
  %v1183 = vadd.f32 %v1109, %v1182
  %v1184 = vpop.f32.mrb[0].mxu0
  %1185 = vmatprep.mubr.f32.mxu0 0.0
  %1186 = vmatmul.mubr.f32.gmra.mrb[0].mxu0 %v1020
  %v1187 = vpop.f32.mrb[0].mxu0
  %v1188 = vadd.f32 %v1109, %v1187
  %v1189 = vpop.f32.mrb[0].mxu0
  %1190 = vmatprep.mubr.f32.mxu0 0.0
  %1191 = vmatmul.mubr.f32.gmra.mrb[0].mxu0 %v1025
  %v1192 = vpop.f32.mrb[0].mxu0
  %v1193 = vadd.f32 %v1109, %v1192
  %v1194 = vpop.f32.mrb[0].mxu0
  %1195 = vmatprep.mubr.f32.mxu0 0.0
  %1196 = vmatmul.mubr.f32.gmra.mrb[0].mxu0 %v1030
  %v1197 = vpop.f32.mrb[0].mxu0
  %v1198 = vadd.f32 %v1109, %v1197
  %v1199 = vpop.f32.mrb[0].mxu0
  %1200 = vmatprep.mubr.f32.mxu0 0.0
  %1201 = vmatmul.mubr.f32.gmra.mrb[0].mxu0 %v1035
  %v1202 = vpop.f32.mrb[0].mxu0
  %v1203 = vadd.f32 %v1109, %v1202
  %v1204 = vpop.f32.mrb[0].mxu0
  %1205 = vmatprep.mubr.f32.mxu0 0.0
  %1206 = vmatmul.mubr.f32.gmra.mrb[0].mxu0 %v1040
  %v1207 = vpop.f32.mrb[0].mxu0
  %v1208 = vadd.f32 %v1109, %v1207
  %v1209 = vpop.f32.mrb[0].mxu0
  %1210 = vmatprep.mubr.f32.mxu0 0.0
  %1211 = vmatmul.mubr.f32.gmra.mrb[0].mxu0 %v1045
  %v1212 = vpop.f32.mrb[0].mxu0
  %v1213 = vadd.f32 %v1109, %v1212
  %v1214 = vpop.f32.mrb[0].mxu0
  %1215 = vmatprep.mubr.f32.mxu0 0.0
  %1216 = vmatmul.mubr.f32.gmra.mrb[0].mxu0 %v1050
  %v1217 = vpop.f32.mrb[0].mxu0
  %v1218 = vadd.f32 %v1109, %v1217
  %v1219 = vpop.f32.mrb[0].mxu0
  %1220 = vmatprep.mubr.f32.mxu0 0.0
  %1221 = vmatmul.mubr.f32.gmra.mrb[0].mxu0 %v1055
  %v1222 = vpop.f32.mrb[0].mxu0
  %v1223 = vadd.f32 %v1109, %v1222
  %v1224 = vpop.f32.mrb[0].mxu0
  %1225 = vmatprep.mubr.f32.mxu0 0.0
  %1226 = vmatmul.mubr.f32.gmra.mrb[0].mxu0 %v1060
  %v1227 = vpop.f32.mrb[0].mxu0
  %v1228 = vadd.f32 %v1109, %v1227
  %v1229 = vpop.f32.mrb[0].mxu0
  %1230 = vmatprep.mubr.f32.mxu0 0.0
  %1231 = vmatmul.mubr.f32.gmra.mrb[0].mxu0 %v1065
  %v1232 = vpop.f32.mrb[0].mxu0
  %v1233 = vadd.f32 %v1109, %v1232
  %v1234 = vpop.f32.mrb[0].mxu0
  %1235 = vmatprep.mubr.f32.mxu0 0.0
  %1236 = vmatmul.mubr.f32.gmra.mrb[0].mxu0 %v1070
  %v1237 = vpop.f32.mrb[0].mxu0
  %v1238 = vadd.f32 %v1109, %v1237
  %v1239 = vpop.f32.mrb[0].mxu0
  %1240 = vmatprep.mubr.f32.mxu0 0.0
  %1241 = vmatmul.mubr.f32.gmra.mrb[0].mxu0 %v1075
  %v1242 = vpop.f32.mrb[0].mxu0
  %v1243 = vadd.f32 %v1109, %v1242
  %v1244 = vpop.f32.mrb[0].mxu0
  %1245 = vmatprep.mubr.f32.mxu0 0.0
  %1246 = vmatmul.mubr.f32.gmra.mrb[0].mxu0 %v1080
  %v1247 = vpop.f32.mrb[0].mxu0
  %v1248 = vadd.f32 %v1109, %v1247
  %v1249 = vpop.f32.mrb[0].mxu0
  %1250 = vmatprep.mubr.f32.mxu0 0.0
  %1251 = vmatmul.mubr.f32.gmra.mrb[0].mxu0 %v1085
  %v1252 = vpop.f32.mrb[0].mxu0
  %v1253 = vadd.f32 %v1109, %v1252
  %v1254 = vpop.f32.mrb[0].mxu0
  %1255 = vdwg.mxu0
  %v1256 = vlaneseq
  %v1257 = vshrl.u32 %v1256, 7
  %v1258 = vadd.s32 %v1257, 8
  %v1259 = vadd.s32 %v1257, 16
  %v1260 = vadd.s32 %v1257, 24
  %v1261 = vadd.s32 %v1257, 32
  %v1262 = vadd.s32 %v1257, 40
  %v1263 = vadd.s32 %v1257, 48
  %v1264 = vadd.s32 %v1257, 56
  %v1265 = vadd.s32 %v1257, 64
  %v1266 = vadd.s32 %v1257, 72
  %v1267 = vadd.s32 %v1257, 80
  %v1268 = vadd.s32 %v1257, 88
  %v1269 = vadd.s32 %v1257, 96
  %v1270 = vadd.s32 %v1257, 104
  %v1271 = vadd.s32 %v1257, 112
  %v1272 = vadd.s32 %v1257, 120
  %vm1273 = vcmp.lt.s32.totalorder %v1257, 16
  %vm1274 = vcmp.lt.s32.totalorder %v1258, 16
  %vm1275 = vcmp.lt.s32.totalorder %v1259, 16
  %vm1276 = vcmp.lt.s32.totalorder %v1260, 16
  %vm1277 = vcmp.lt.s32.totalorder %v1261, 16
  %vm1278 = vcmp.lt.s32.totalorder %v1262, 16
  %vm1279 = vcmp.lt.s32.totalorder %v1263, 16
  %vm1280 = vcmp.lt.s32.totalorder %v1264, 16
  %vm1281 = vcmp.lt.s32.totalorder %v1265, 16
  %vm1282 = vcmp.lt.s32.totalorder %v1266, 16
  %vm1283 = vcmp.lt.s32.totalorder %v1267, 16
  %vm1284 = vcmp.lt.s32.totalorder %v1268, 16
  %vm1285 = vcmp.lt.s32.totalorder %v1269, 16
  %vm1286 = vcmp.lt.s32.totalorder %v1270, 16
  %vm1287 = vcmp.lt.s32.totalorder %v1271, 16
  %vm1288 = vcmp.lt.s32.totalorder %v1272, 16
  %v1289 = vsel %vm1273, %v1178, 0.0
  %v1290 = vsel %vm1274, %v1183, 0.0
  %v1291 = vsel %vm1275, %v1188, 0.0
  %v1292 = vsel %vm1276, %v1193, 0.0
  %v1293 = vsel %vm1277, %v1198, 0.0
  %v1294 = vsel %vm1278, %v1203, 0.0
  %v1295 = vsel %vm1279, %v1208, 0.0
  %v1296 = vsel %vm1280, %v1213, 0.0
  %v1297 = vsel %vm1281, %v1218, 0.0
  %v1298 = vsel %vm1282, %v1223, 0.0
  %v1299 = vsel %vm1283, %v1228, 0.0
  %v1300 = vsel %vm1284, %v1233, 0.0
  %v1301 = vsel %vm1285, %v1238, 0.0
  %v1302 = vsel %vm1286, %v1243, 0.0
  %v1303 = vsel %vm1287, %v1248, 0.0
  %v1304 = vsel %vm1288, %v1253, 0.0
  %v1305 = vld [vmem:[%s9] sm:$0x7]
  %v1306 = vld [vmem:[%s4] sm:$0xff]
  %v1307 = vld [vmem:[%s4 + $0x8] sm:$0xff]
  %v1308 = vld [vmem:[%s4 + $0x10] sm:$0xff]
  %v1309 = vld [vmem:[%s4 + $0x18] sm:$0xff]
  %v1310 = vld [vmem:[%s4 + $0x20] sm:$0xff]
  %v1311 = vld [vmem:[%s4 + $0x28] sm:$0xff]
  %v1312 = vld [vmem:[%s4 + $0x30] sm:$0xff]
  %v1313 = vld [vmem:[%s4 + $0x38] sm:$0xff]
  %v1314 = vld [vmem:[%s4 + $0x40] sm:$0xff]
  %v1315 = vld [vmem:[%s4 + $0x48] sm:$0xff]
  %v1316 = vld [vmem:[%s4 + $0x50] sm:$0xff]
  %v1317 = vld [vmem:[%s4 + $0x58] sm:$0xff]
  %v1318 = vld [vmem:[%s4 + $0x60] sm:$0xff]
  %v1319 = vld [vmem:[%s4 + $0x68] sm:$0xff]
  %v1320 = vld [vmem:[%s4 + $0x70] sm:$0xff]
  %v1321 = vld [vmem:[%s4 + $0x78] sm:$0xff]
  %v1322 = vlaneseq
  %v1323 = vshrl.u32 %v1322, 7
  %v1324 = vsub.s32 1, %v1323
  %v1325 = vrot.slane %v1305, %v1324
  %v1326 = vmul.f32 %v1325, %v1289
  %v1327 = vmul.f32 %v1325, %v1290
  %v1328 = vmul.f32 %v1325, %v1291
  %v1329 = vmul.f32 %v1325, %v1292
  %v1330 = vmul.f32 %v1325, %v1293
  %v1331 = vmul.f32 %v1325, %v1294
  %v1332 = vmul.f32 %v1325, %v1295
  %v1333 = vmul.f32 %v1325, %v1296
  %v1334 = vmul.f32 %v1325, %v1297
  %v1335 = vmul.f32 %v1325, %v1298
  %v1336 = vmul.f32 %v1325, %v1299
  %v1337 = vmul.f32 %v1325, %v1300
  %v1338 = vmul.f32 %v1325, %v1301
  %v1339 = vmul.f32 %v1325, %v1302
  %v1340 = vmul.f32 %v1325, %v1303
  %v1341 = vmul.f32 %v1325, %v1304
  %1342 = vmatprep.subr.mxu0 0.0
  %1343 = vmatpush1.msra.mxu0 %v1289
  %1344 = vmatprep.subr.mxu0 0.0
  %1345 = vmatpush1.msra.mxu0 %v1290
  %1346 = vmatprep.subr.mxu0 0.0
  %1347 = vmatpush1.msra.mxu0 %v1291
  %1348 = vmatprep.subr.mxu0 0.0
  %1349 = vmatpush1.msra.mxu0 %v1292
  %1350 = vmatprep.subr.mxu0 0.0
  %1351 = vmatpush1.msra.mxu0 %v1293
  %1352 = vmatprep.subr.mxu0 0.0
  %1353 = vmatpush1.msra.mxu0 %v1294
  %1354 = vmatprep.subr.mxu0 0.0
  %1355 = vmatpush1.msra.mxu0 %v1295
  %1356 = vmatprep.subr.mxu0 0.0
  %1357 = vmatpush1.msra.mxu0 %v1296
  %1358 = vmatprep.subr.mxu0 0.0
  %1359 = vmatpush1.msra.mxu0 %v1297
  %1360 = vmatprep.subr.mxu0 0.0
  %1361 = vmatpush1.msra.mxu0 %v1298
  %1362 = vmatprep.subr.mxu0 0.0
  %1363 = vmatpush1.msra.mxu0 %v1299
  %1364 = vmatprep.subr.mxu0 0.0
  %1365 = vmatpush1.msra.mxu0 %v1300
  %1366 = vmatprep.subr.mxu0 0.0
  %1367 = vmatpush1.msra.mxu0 %v1301
  %1368 = vmatprep.subr.mxu0 0.0
  %1369 = vmatpush1.msra.mxu0 %v1302
  %1370 = vmatprep.subr.mxu0 0.0
  %1371 = vmatpush1.msra.mxu0 %v1303
  %1372 = vmatprep.subr.mxu0 0.0
  %1373 = vmatpush1.msra.mxu0 %v1304
  %1374 = vmatprep.subr.mxu0 0.0
  %1375 = vmatpush1.msra.mxu0 0.0
  %1376 = vmatprep.subr.mxu0 0.0
  %1377 = vmatpush1.msra.mxu0 0.0
  %1378 = vmatprep.subr.mxu0 0.0
  %1379 = vmatpush1.msra.mxu0 0.0
  %1380 = vmatprep.subr.mxu0 0.0
  %1381 = vmatpush1.msra.mxu0 0.0
  %1382 = vmatprep.subr.mxu0 0.0
  %1383 = vmatpush1.msra.mxu0 0.0
  %1384 = vmatprep.subr.mxu0 0.0
  %1385 = vmatpush1.msra.mxu0 0.0
  %1386 = vmatprep.subr.mxu0 0.0
  %1387 = vmatpush1.msra.mxu0 0.0
  %1388 = vmatprep.subr.mxu0 0.0
  %1389 = vmatpush1.msra.mxu0 0.0
  %1390 = vmatprep.subr.mxu0 0.0
  %1391 = vmatpush1.msra.mxu0 0.0
  %1392 = vmatprep.subr.mxu0 0.0
  %1393 = vmatpush1.msra.mxu0 0.0
  %1394 = vmatprep.subr.mxu0 0.0
  %1395 = vmatpush1.msra.mxu0 0.0
  %1396 = vmatprep.subr.mxu0 0.0
  %1397 = vmatpush1.msra.mxu0 0.0
  %1398 = vmatprep.subr.mxu0 0.0
  %1399 = vmatpush1.msra.mxu0 0.0
  %1400 = vmatprep.subr.mxu0 0.0
  %1401 = vmatpush1.msra.mxu0 0.0
  %1402 = vmatprep.subr.mxu0 0.0
  %1403 = vmatpush1.msra.mxu0 0.0
  %1404 = vmatprep.subr.mxu0 0.0
  %1405 = vmatpush1.msra.mxu0 0.0
  %1406 = vmatprep.mubr.f32.mxu0 0.0
  %1407 = vmatmul.mubr.f32.gmra.mrb[0].mxu0 %v1306
  %v1408 = vpop.f32.mrb[0].mxu0
  %v1409 = vadd.f32 0.0, %v1408
  %v1410 = vpop.f32.mrb[0].mxu0
  %1411 = vmatprep.mubr.f32.mxu0 0.0
  %1412 = vmatmul.mubr.f32.gmra.mrb[0].mxu0 %v1307
  %v1413 = vpop.f32.mrb[0].mxu0
  %v1414 = vadd.f32 0.0, %v1413
  %v1415 = vpop.f32.mrb[0].mxu0
  %1416 = vmatprep.mubr.f32.mxu0 0.0
  %1417 = vmatmul.mubr.f32.gmra.mrb[0].mxu0 %v1308
  %v1418 = vpop.f32.mrb[0].mxu0
  %v1419 = vadd.f32 0.0, %v1418
  %v1420 = vpop.f32.mrb[0].mxu0
  %1421 = vmatprep.mubr.f32.mxu0 0.0
  %1422 = vmatmul.mubr.f32.gmra.mrb[0].mxu0 %v1309
  %v1423 = vpop.f32.mrb[0].mxu0
  %v1424 = vadd.f32 0.0, %v1423
  %v1425 = vpop.f32.mrb[0].mxu0
  %1426 = vmatprep.mubr.f32.mxu0 0.0
  %1427 = vmatmul.mubr.f32.gmra.mrb[0].mxu0 %v1310
  %v1428 = vpop.f32.mrb[0].mxu0
  %v1429 = vadd.f32 0.0, %v1428
  %v1430 = vpop.f32.mrb[0].mxu0
  %1431 = vmatprep.mubr.f32.mxu0 0.0
  %1432 = vmatmul.mubr.f32.gmra.mrb[0].mxu0 %v1311
  %v1433 = vpop.f32.mrb[0].mxu0
  %v1434 = vadd.f32 0.0, %v1433
  %v1435 = vpop.f32.mrb[0].mxu0
  %1436 = vmatprep.mubr.f32.mxu0 0.0
  %1437 = vmatmul.mubr.f32.gmra.mrb[0].mxu0 %v1312
  %v1438 = vpop.f32.mrb[0].mxu0
  %v1439 = vadd.f32 0.0, %v1438
  %v1440 = vpop.f32.mrb[0].mxu0
  %1441 = vmatprep.mubr.f32.mxu0 0.0
  %1442 = vmatmul.mubr.f32.gmra.mrb[0].mxu0 %v1313
  %v1443 = vpop.f32.mrb[0].mxu0
  %v1444 = vadd.f32 0.0, %v1443
  %v1445 = vpop.f32.mrb[0].mxu0
  %1446 = vmatprep.mubr.f32.mxu0 0.0
  %1447 = vmatmul.mubr.f32.gmra.mrb[0].mxu0 %v1314
  %v1448 = vpop.f32.mrb[0].mxu0
  %v1449 = vadd.f32 0.0, %v1448
  %v1450 = vpop.f32.mrb[0].mxu0
  %1451 = vmatprep.mubr.f32.mxu0 0.0
  %1452 = vmatmul.mubr.f32.gmra.mrb[0].mxu0 %v1315
  %v1453 = vpop.f32.mrb[0].mxu0
  %v1454 = vadd.f32 0.0, %v1453
  %v1455 = vpop.f32.mrb[0].mxu0
  %1456 = vmatprep.mubr.f32.mxu0 0.0
  %1457 = vmatmul.mubr.f32.gmra.mrb[0].mxu0 %v1316
  %v1458 = vpop.f32.mrb[0].mxu0
  %v1459 = vadd.f32 0.0, %v1458
  %v1460 = vpop.f32.mrb[0].mxu0
  %1461 = vmatprep.mubr.f32.mxu0 0.0
  %1462 = vmatmul.mubr.f32.gmra.mrb[0].mxu0 %v1317
  %v1463 = vpop.f32.mrb[0].mxu0
  %v1464 = vadd.f32 0.0, %v1463
  %v1465 = vpop.f32.mrb[0].mxu0
  %1466 = vmatprep.mubr.f32.mxu0 0.0
  %1467 = vmatmul.mubr.f32.gmra.mrb[0].mxu0 %v1318
  %v1468 = vpop.f32.mrb[0].mxu0
  %v1469 = vadd.f32 0.0, %v1468
  %v1470 = vpop.f32.mrb[0].mxu0
  %1471 = vmatprep.mubr.f32.mxu0 0.0
  %1472 = vmatmul.mubr.f32.gmra.mrb[0].mxu0 %v1319
  %v1473 = vpop.f32.mrb[0].mxu0
  %v1474 = vadd.f32 0.0, %v1473
  %v1475 = vpop.f32.mrb[0].mxu0
  %1476 = vmatprep.mubr.f32.mxu0 0.0
  %1477 = vmatmul.mubr.f32.gmra.mrb[0].mxu0 %v1320
  %v1478 = vpop.f32.mrb[0].mxu0
  %v1479 = vadd.f32 0.0, %v1478
  %v1480 = vpop.f32.mrb[0].mxu0
  %1481 = vmatprep.mubr.f32.mxu0 0.0
  %1482 = vmatmul.mubr.f32.gmra.mrb[0].mxu0 %v1321
  %v1483 = vpop.f32.mrb[0].mxu0
  %v1484 = vadd.f32 0.0, %v1483
  %v1485 = vpop.f32.mrb[0].mxu0
  %1486 = vdwg.mxu0
  %v1487 = vlaneseq
  %v1488 = vshrl.u32 %v1487, 7
  %v1489 = vsub.s32 0, %v1488
  %v1490 = vrot.slane %v1305, %v1489
  %v1491 = vmul.f32 %v1490, %v1409
  %v1492 = vmul.f32 %v1490, %v1414
  %v1493 = vmul.f32 %v1490, %v1419
  %v1494 = vmul.f32 %v1490, %v1424
  %v1495 = vmul.f32 %v1490, %v1429
  %v1496 = vmul.f32 %v1490, %v1434
  %v1497 = vmul.f32 %v1490, %v1439
  %v1498 = vmul.f32 %v1490, %v1444
  %v1499 = vmul.f32 %v1490, %v1449
  %v1500 = vmul.f32 %v1490, %v1454
  %v1501 = vmul.f32 %v1490, %v1459
  %v1502 = vmul.f32 %v1490, %v1464
  %v1503 = vmul.f32 %v1490, %v1469
  %v1504 = vmul.f32 %v1490, %v1474
  %v1505 = vmul.f32 %v1490, %v1479
  %v1506 = vmul.f32 %v1490, %v1484
  %v1507 = vadd.f32 %v1326, %v1491
  %v1508 = vadd.f32 %v1327, %v1492
  %v1509 = vadd.f32 %v1328, %v1493
  %v1510 = vadd.f32 %v1329, %v1494
  %v1511 = vadd.f32 %v1330, %v1495
  %v1512 = vadd.f32 %v1331, %v1496
  %v1513 = vadd.f32 %v1332, %v1497
  %v1514 = vadd.f32 %v1333, %v1498
  %v1515 = vadd.f32 %v1334, %v1499
  %v1516 = vadd.f32 %v1335, %v1500
  %v1517 = vadd.f32 %v1336, %v1501
  %v1518 = vadd.f32 %v1337, %v1502
  %v1519 = vadd.f32 %v1338, %v1503
  %v1520 = vadd.f32 %v1339, %v1504
  %v1521 = vadd.f32 %v1340, %v1505
  %v1522 = vadd.f32 %v1341, %v1506
  %v1523 = vlaneseq
  %v1524 = vshrl.u32 %v1523, 7
  %v1525 = vsub.s32 2, %v1524
  %v1526 = vrot.slane %v1305, %v1525
  %v1527 = vmul.f32 %v1526, %v1507
  %v1528 = vmul.f32 %v1526, %v1508
  %v1529 = vmul.f32 %v1526, %v1509
  %v1530 = vmul.f32 %v1526, %v1510
  %v1531 = vmul.f32 %v1526, %v1511
  %v1532 = vmul.f32 %v1526, %v1512
  %v1533 = vmul.f32 %v1526, %v1513
  %v1534 = vmul.f32 %v1526, %v1514
  %v1535 = vmul.f32 %v1526, %v1515
  %v1536 = vmul.f32 %v1526, %v1516
  %v1537 = vmul.f32 %v1526, %v1517
  %v1538 = vmul.f32 %v1526, %v1518
  %v1539 = vmul.f32 %v1526, %v1519
  %v1540 = vmul.f32 %v1526, %v1520
  %v1541 = vmul.f32 %v1526, %v1521
  %v1542 = vmul.f32 %v1526, %v1522
  %v1543 = vadd.f32 %v1527, %v1289
  %v1544 = vadd.f32 %v1528, %v1290
  %v1545 = vadd.f32 %v1529, %v1291
  %v1546 = vadd.f32 %v1530, %v1292
  %v1547 = vadd.f32 %v1531, %v1293
  %v1548 = vadd.f32 %v1532, %v1294
  %v1549 = vadd.f32 %v1533, %v1295
  %v1550 = vadd.f32 %v1534, %v1296
  %v1551 = vadd.f32 %v1535, %v1297
  %v1552 = vadd.f32 %v1536, %v1298
  %v1553 = vadd.f32 %v1537, %v1299
  %v1554 = vadd.f32 %v1538, %v1300
  %v1555 = vadd.f32 %v1539, %v1301
  %v1556 = vadd.f32 %v1540, %v1302
  %v1557 = vadd.f32 %v1541, %v1303
  %v1558 = vadd.f32 %v1542, %v1304
  %v1559 = vmax.f32 %v1543, 0.0
  %v1560 = vmax.f32 %v1544, 0.0
  %v1561 = vmax.f32 %v1545, 0.0
  %v1562 = vmax.f32 %v1546, 0.0
  %v1563 = vmax.f32 %v1547, 0.0
  %v1564 = vmax.f32 %v1548, 0.0
  %v1565 = vmax.f32 %v1549, 0.0
  %v1566 = vmax.f32 %v1550, 0.0
  %v1567 = vmax.f32 %v1551, 0.0
  %v1568 = vmax.f32 %v1552, 0.0
  %v1569 = vmax.f32 %v1553, 0.0
  %v1570 = vmax.f32 %v1554, 0.0
  %v1571 = vmax.f32 %v1555, 0.0
  %v1572 = vmax.f32 %v1556, 0.0
  %v1573 = vmax.f32 %v1557, 0.0
  %v1574 = vmax.f32 %v1558, 0.0
  %v1575 = vlaneseq
  %v1576 = vand.u32 %v1575, 127
  %vm1577 = vcmp.lt.s32.totalorder %v1576, 32
  %vm1578 = vmand %vm1273, %vm1577
  %vm1579 = vmand %vm1274, %vm1577
  %vm1580 = vmand %vm1275, %vm1577
  %vm1581 = vmand %vm1276, %vm1577
  %vm1582 = vmand %vm1277, %vm1577
  %vm1583 = vmand %vm1278, %vm1577
  %vm1584 = vmand %vm1279, %vm1577
  %vm1585 = vmand %vm1280, %vm1577
  %vm1586 = vmand %vm1281, %vm1577
  %vm1587 = vmand %vm1282, %vm1577
  %vm1588 = vmand %vm1283, %vm1577
  %vm1589 = vmand %vm1284, %vm1577
  %vm1590 = vmand %vm1285, %vm1577
  %vm1591 = vmand %vm1286, %vm1577
  %vm1592 = vmand %vm1287, %vm1577
  %vm1593 = vmand %vm1288, %vm1577
  %v1594 = vsel %vm1578, %v1559, 0.0
  %v1595 = vsel %vm1579, %v1560, 0.0
  %v1596 = vsel %vm1580, %v1561, 0.0
  %v1597 = vsel %vm1581, %v1562, 0.0
  %v1598 = vsel %vm1582, %v1563, 0.0
  %v1599 = vsel %vm1583, %v1564, 0.0
  %v1600 = vsel %vm1584, %v1565, 0.0
  %v1601 = vsel %vm1585, %v1566, 0.0
  %v1602 = vsel %vm1586, %v1567, 0.0
  %v1603 = vsel %vm1587, %v1568, 0.0
  %v1604 = vsel %vm1588, %v1569, 0.0
  %v1605 = vsel %vm1589, %v1570, 0.0
  %v1606 = vsel %vm1590, %v1571, 0.0
  %v1607 = vsel %vm1591, %v1572, 0.0
  %v1608 = vsel %vm1592, %v1573, 0.0
  %v1609 = vsel %vm1593, %v1574, 0.0
  %v1610 = vadd.f32 %v1594, %v1595
  %v1611 = vadd.f32 %v1610, %v1596
  %v1612 = vadd.f32 %v1611, %v1597
  %v1613 = vadd.f32 %v1612, %v1598
  %v1614 = vadd.f32 %v1613, %v1599
  %v1615 = vadd.f32 %v1614, %v1600
  %v1616 = vadd.f32 %v1615, %v1601
  %v1617 = vadd.f32 %v1616, %v1602
  %v1618 = vadd.f32 %v1617, %v1603
  %v1619 = vadd.f32 %v1618, %v1604
  %v1620 = vadd.f32 %v1619, %v1605
  %v1621 = vadd.f32 %v1620, %v1606
  %v1622 = vadd.f32 %v1621, %v1607
  %v1623 = vadd.f32 %v1622, %v1608
  %v1624 = vadd.f32 %v1623, %v1609
  %v1625 = vrot.slane %v1624, 4
  %v1626 = vadd.f32 %v1624, %v1625
  %v1627 = vrot.slane %v1626, 2
  %v1628 = vadd.f32 %v1626, %v1627
  %v1629 = vrot.slane %v1628, 1
  %v1630 = vadd.f32 %v1628, %v1629
  %v1631 = vmul.f32 %v1630, 0.0625
  %vm1632 = vcmask 1040384
  %v1633 = vsel %vm1632, %v1630, 0.0
  %1634 = vadd.xlane.f32.xlu0 %v1633
  %v1635 = vpop.xlane.xlu0 %1634
  %v1636 = vrot.slane %v1635, 4
  %v1637 = vadd.f32 %v1635, %v1636
  %v1638 = vrot.slane %v1637, 2
  %v1639 = vadd.f32 %v1637, %v1638
  %v1640 = vrot.slane %v1639, 1
  %v1641 = vadd.f32 %v1639, %v1640
  %s1642 = vtos %v1641
  %s1643 = smul.f32 %s1642, 0.001953125
  %v1644 = vstv %s1643
  %v1645 = vsub.f32 %v1594, %v1644
  %v1646 = vsub.f32 %v1595, %v1644
  %v1647 = vsub.f32 %v1596, %v1644
  %v1648 = vsub.f32 %v1597, %v1644
  %v1649 = vsub.f32 %v1598, %v1644
  %v1650 = vsub.f32 %v1599, %v1644
  %v1651 = vsub.f32 %v1600, %v1644
  %v1652 = vsub.f32 %v1601, %v1644
  %v1653 = vsub.f32 %v1602, %v1644
  %v1654 = vsub.f32 %v1603, %v1644
  %v1655 = vsub.f32 %v1604, %v1644
  %v1656 = vsub.f32 %v1605, %v1644
  %v1657 = vsub.f32 %v1606, %v1644
  %v1658 = vsub.f32 %v1607, %v1644
  %v1659 = vsub.f32 %v1608, %v1644
  %v1660 = vsub.f32 %v1609, %v1644
  %v1661 = vsel %vm1578, %v1645, 0.0
  %v1662 = vsel %vm1579, %v1646, 0.0
  %v1663 = vsel %vm1580, %v1647, 0.0
  %v1664 = vsel %vm1581, %v1648, 0.0
  %v1665 = vsel %vm1582, %v1649, 0.0
  %v1666 = vsel %vm1583, %v1650, 0.0
  %v1667 = vsel %vm1584, %v1651, 0.0
  %v1668 = vsel %vm1585, %v1652, 0.0
  %v1669 = vsel %vm1586, %v1653, 0.0
  %v1670 = vsel %vm1587, %v1654, 0.0
  %v1671 = vsel %vm1588, %v1655, 0.0
  %v1672 = vsel %vm1589, %v1656, 0.0
  %v1673 = vsel %vm1590, %v1657, 0.0
  %v1674 = vsel %vm1591, %v1658, 0.0
  %v1675 = vsel %vm1592, %v1659, 0.0
  %v1676 = vsel %vm1593, %v1660, 0.0
  %v1677 = vmul.f32 %v1661, %v1661
  %v1678 = vmul.f32 %v1662, %v1662
  %v1679 = vmul.f32 %v1663, %v1663
  %v1680 = vmul.f32 %v1664, %v1664
  %v1681 = vmul.f32 %v1665, %v1665
  %v1682 = vmul.f32 %v1666, %v1666
  %v1683 = vmul.f32 %v1667, %v1667
  %v1684 = vmul.f32 %v1668, %v1668
  %v1685 = vmul.f32 %v1669, %v1669
  %v1686 = vmul.f32 %v1670, %v1670
  %v1687 = vmul.f32 %v1671, %v1671
  %v1688 = vmul.f32 %v1672, %v1672
  %v1689 = vmul.f32 %v1673, %v1673
  %v1690 = vmul.f32 %v1674, %v1674
  %v1691 = vmul.f32 %v1675, %v1675
  %v1692 = vmul.f32 %v1676, %v1676
  %v1693 = vadd.f32 %v1677, %v1678
  %v1694 = vadd.f32 %v1693, %v1679
  %v1695 = vadd.f32 %v1694, %v1680
  %v1696 = vadd.f32 %v1695, %v1681
  %v1697 = vadd.f32 %v1696, %v1682
  %v1698 = vadd.f32 %v1697, %v1683
  %v1699 = vadd.f32 %v1698, %v1684
  %v1700 = vadd.f32 %v1699, %v1685
  %v1701 = vadd.f32 %v1700, %v1686
  %v1702 = vadd.f32 %v1701, %v1687
  %v1703 = vadd.f32 %v1702, %v1688
  %v1704 = vadd.f32 %v1703, %v1689
  %v1705 = vadd.f32 %v1704, %v1690
  %v1706 = vadd.f32 %v1705, %v1691
  %v1707 = vadd.f32 %v1706, %v1692
  %1708 = vadd.xlane.f32.xlu0 %v1707
  %v1709 = vpop.xlane.xlu0 %1708
  %v1710 = vrot.slane %v1709, 4
  %v1711 = vadd.f32 %v1709, %v1710
  %v1712 = vrot.slane %v1711, 2
  %v1713 = vadd.f32 %v1711, %v1712
  %v1714 = vrot.slane %v1713, 1
  %v1715 = vadd.f32 %v1713, %v1714
  %s1716 = vtos %v1715
  %s1717 = smul.f32 %s1716, 0.0019569471
  %v1718 = vsub.f32 %v1594, %v1631
  %v1719 = vsub.f32 %v1595, %v1631
  %v1720 = vsub.f32 %v1596, %v1631
  %v1721 = vsub.f32 %v1597, %v1631
  %v1722 = vsub.f32 %v1598, %v1631
  %v1723 = vsub.f32 %v1599, %v1631
  %v1724 = vsub.f32 %v1600, %v1631
  %v1725 = vsub.f32 %v1601, %v1631
  %v1726 = vsub.f32 %v1602, %v1631
  %v1727 = vsub.f32 %v1603, %v1631
  %v1728 = vsub.f32 %v1604, %v1631
  %v1729 = vsub.f32 %v1605, %v1631
  %v1730 = vsub.f32 %v1606, %v1631
  %v1731 = vsub.f32 %v1607, %v1631
  %v1732 = vsub.f32 %v1608, %v1631
  %v1733 = vsub.f32 %v1609, %v1631
  %v1734 = vstv %s1717
  %v1735 = vrsqrt.pop %v1734
  %s1736 = vtos %v1735
  %v1737 = vstv %s1736
  %v1738 = vmul.f32 %v1718, %v1737
  %v1739 = vmul.f32 %v1719, %v1737
  %v1740 = vmul.f32 %v1720, %v1737
  %v1741 = vmul.f32 %v1721, %v1737
  %v1742 = vmul.f32 %v1722, %v1737
  %v1743 = vmul.f32 %v1723, %v1737
  %v1744 = vmul.f32 %v1724, %v1737
  %v1745 = vmul.f32 %v1725, %v1737
  %v1746 = vmul.f32 %v1726, %v1737
  %v1747 = vmul.f32 %v1727, %v1737
  %v1748 = vmul.f32 %v1728, %v1737
  %v1749 = vmul.f32 %v1729, %v1737
  %v1750 = vmul.f32 %v1730, %v1737
  %v1751 = vmul.f32 %v1731, %v1737
  %v1752 = vmul.f32 %v1732, %v1737
  %v1753 = vmul.f32 %v1733, %v1737
  %v1754 = vsel %vm1578, %v1738, 0.0
  %v1755 = vsel %vm1579, %v1739, 0.0
  %v1756 = vsel %vm1580, %v1740, 0.0
  %v1757 = vsel %vm1581, %v1741, 0.0
  %v1758 = vsel %vm1582, %v1742, 0.0
  %v1759 = vsel %vm1583, %v1743, 0.0
  %v1760 = vsel %vm1584, %v1744, 0.0
  %v1761 = vsel %vm1585, %v1745, 0.0
  %v1762 = vsel %vm1586, %v1746, 0.0
  %v1763 = vsel %vm1587, %v1747, 0.0
  %v1764 = vsel %vm1588, %v1748, 0.0
  %v1765 = vsel %vm1589, %v1749, 0.0
  %v1766 = vsel %vm1590, %v1750, 0.0
  %v1767 = vsel %vm1591, %v1751, 0.0
  %v1768 = vsel %vm1592, %v1752, 0.0
  %v1769 = vsel %vm1593, %v1753, 0.0
  %1770 = vst [vmem:[%s10] sm:$0xff] %v1754
  %1771 = vst [vmem:[%s10 + $0x8] sm:$0xff] %v1755
  %1772 = vst [vmem:[%s10 + $0x10] sm:$0xff] %v1756
  %1773 = vst [vmem:[%s10 + $0x18] sm:$0xff] %v1757
  %1774 = vst [vmem:[%s10 + $0x20] sm:$0xff] %v1758
  %1775 = vst [vmem:[%s10 + $0x28] sm:$0xff] %v1759
  %1776 = vst [vmem:[%s10 + $0x30] sm:$0xff] %v1760
  %1777 = vst [vmem:[%s10 + $0x38] sm:$0xff] %v1761
  %1778 = vst [vmem:[%s10 + $0x40] sm:$0xff] %v1762
  %1779 = vst [vmem:[%s10 + $0x48] sm:$0xff] %v1763
  %1780 = vst [vmem:[%s10 + $0x50] sm:$0xff] %v1764
  %1781 = vst [vmem:[%s10 + $0x58] sm:$0xff] %v1765
  %1782 = vst [vmem:[%s10 + $0x60] sm:$0xff] %v1766
  %1783 = vst [vmem:[%s10 + $0x68] sm:$0xff] %v1767
  %1784 = vst [vmem:[%s10 + $0x70] sm:$0xff] %v1768
  %1785 = vst [vmem:[%s10 + $0x78] sm:$0xff] %v1769
  // Predicated region
  $region42: #{scdgn1_forward.1} parent=0 // pred_check
    _
  $region43: #{scdgn1_forward.1} parent=0 // pred_check_branch
    %1787 = sbr.rel (0) target = $region45
  $region44: #{scdgn1_forward.1} parent=0 // pred_region
    _
  $region45: #{scdgn1_forward.1} parent=0 // pred_fallthru
    _
  // Predicated region
  $region46: #{scdgn1_forward.1} parent=0 // pred_check
    _
  $region47: #{scdgn1_forward.1} parent=0 // pred_check_branch
    %1789 = sbr.rel (0) target = $region49
  $region48: #{scdgn1_forward.1} parent=0 // pred_region
    _
  $region49: #{scdgn1_forward.1} parent=0 // pred_fallthru
    _

</llo_original>
